<compile_context>
chip_gen: v7x
topology: tpu7x:2x2x1
jax: 0.10.0
libtpu: 0.0.40
codegen_flags: <defaults>
</compile_context>

<pallas_src>
import math

import jax
import jax.numpy as jnp
from jax.experimental import pallas as pl
from jax.experimental.pallas import tpu as pltpu


# ------------------------------- kernel --------------------------------------
def _make_kernel(nb):
    """Build a kernel that processes `nb` batch elements per grid step.

    Ref shapes seen by the kernel:
      x*_ref : (nb, C_pad, L)   activations, channel-padded, pixels on lanes
      w*_ref : (C_pad, C_pad)   1x1-conv weights (wq already holds 1/sqrt(C))
      b*_ref : (C_pad, 1)
      o_ref  : (nb, C_pad, L)
    """

    def kernel(xq_ref, xk_ref, xv_ref,
               wq_ref, bq_ref, wk_ref, bk_ref, wv_ref, bv_ref, o_ref):
        wq = wq_ref[...]; bq = bq_ref[...]
        wk = wk_ref[...]; bk = bk_ref[...]
        wv = wv_ref[...]; bv = bv_ref[...]

        for n in range(nb):                       # static, fully unrolled
            xq = xq_ref[n]                        # (C_pad, L); also residual
            xk = xk_ref[n]
            xv = xv_ref[n]

            # 1x1 convolutions == per-pixel channel-mixing matmuls.
            # NOTE: 1/sqrt(C) is already folded into wq / bq.
            q = jnp.dot(wq, xq, preferred_element_type=jnp.float32) + bq
            k = jnp.dot(wk, xk, preferred_element_type=jnp.float32) + bk
            v = jnp.dot(wv, xv, preferred_element_type=jnp.float32) + bv

            # s[i, j] = sum_c k[c, i] * q[c, j]   -> (L, L)
            s = jax.lax.dot_general(k, q, (((0,), (0,)), ((), ())),
                                    preferred_element_type=jnp.float32)

            # Softmax over i (torch dim=1) with DEFERRED normalization:
            # normalize the small (C_pad, L) output instead of the (L, L) tile.
            s = s - jnp.max(s, axis=0, keepdims=True)
            p = jnp.exp(s)
            colsum = jnp.sum(p, axis=0, keepdims=True)            # (1, L)

            out = jnp.dot(v, p, preferred_element_type=jnp.float32)  # (C_pad, L)
            out = out * pl.reciprocal(colsum, approx=True)           # EUP slot
            o_ref[n] = xq + out                                      # residual

    return kernel


# ----------------------------- device helper ----------------------------------
def _single_tensorcore_chip():
    """True for chips with a single TensorCore (v5e / v6e)."""
    try:
        kind = jax.devices()[0].device_kind.lower()
    except Exception:
        return False
    return any(tag in kind for tag in
               ("v5e", "v5 lite", "v5lite", "v6e", "v6 lite", "v6lite"))


# ------------------------------- wrapper --------------------------------------
def self_attention_forward(query, key, value, params):
    """Fused SelfAttention forward.  `params` must come from prepare_params()
    (channel-padded to the sublane tile, wq/bq pre-scaled by 1/sqrt(C))."""
    N, C, H, W = query.shape
    L = H * W
    C_pad = params['wq'].shape[0]

    def prep(x):
        x = x.reshape(N, C, L)
        if C_pad != C:
            x = jnp.pad(x, ((0, 0), (0, C_pad - C), (0, 0)))
        return x

    xq, xk, xv = prep(query), prep(key), prep(value)

    # Grid layout: one step with all batches on single-TC chips (v5e/v6e),
    # one parallel step per batch on multi-TC chips (v7x, megacore).
    if _single_tensorcore_chip():
        grid_steps, nb = 1, N
    else:
        grid_steps, nb = N, 1

    data_spec = pl.BlockSpec((nb, C_pad, L), lambda g: (g, 0, 0))
    w_spec = pl.BlockSpec((C_pad, C_pad), lambda g: (0, 0))
    b_spec = pl.BlockSpec((C_pad, 1), lambda g: (0, 0))

    out = pl.pallas_call(
        _make_kernel(nb),
        grid=(grid_steps,),
        in_specs=[data_spec, data_spec, data_spec,
                  w_spec, b_spec, w_spec, b_spec, w_spec, b_spec],
        out_specs=data_spec,
        out_shape=jax.ShapeDtypeStruct((N, C_pad, L), jnp.float32),
        compiler_params=pltpu.CompilerParams(
            dimension_semantics=("parallel",)),
    )(xq, xk, xv,
      params['wq'], params['bq'],
      params['wk'], params['bk'],
      params['wv'], params['bv'])

    # TODO(synk): if H*W grows (L >= ~1024) add a grid axis tiling the output
    # pixel columns so the (L, L) attention tile stays within VMEM (v7x has
    # only 64 MiB/TC) and set vmem_limit_bytes via pltpu.CompilerParams.
    return out[:, :C, :].reshape(N, C, H, W)


# ------------------------------ parameters -------------------------------------
def init_params(key, C):
    # torch Conv2d(k=1) default init: U(-1/sqrt(fan_in), 1/sqrt(fan_in))
    ks = jax.random.split(key, 6)
    bound = 1.0 / math.sqrt(C)

    def u(k, shape):
        return jax.random.uniform(k, shape, jnp.float32, -bound, bound)

    return {
        'wq': u(ks[0], (C, C)), 'bq': u(ks[1], (C, 1)),
        'wk': u(ks[2], (C, C)), 'bk': u(ks[3], (C, 1)),
        'wv': u(ks[4], (C, C)), 'bv': u(ks[5], (C, 1)),
    }


def prepare_params(params, in_channels, c_pad=None):
    """ONE-TIME parameter prep (call OUTSIDE the jitted forward):
      * fold the 1/sqrt(C) attention scale into the query projection,
      * zero-pad weight rows AND columns (and bias rows) up to the fp32
        sublane tile (8) so all kernel tiles are (8,128)-aligned; padded
        channels stay exactly zero end-to-end."""
    if c_pad is None:
        c_pad = max(8, ((in_channels + 7) // 8) * 8)
    scale = 1.0 / math.sqrt(in_channels)

    def pad_w(w):
        return jnp.zeros((c_pad, c_pad), w.dtype).at[:in_channels, :in_channels].set(w)

    def pad_b(b):
        return jnp.zeros((c_pad, 1), b.dtype).at[:in_channels, :].set(b)

    return {
        'wq': pad_w(params['wq'] * scale), 'bq': pad_b(params['bq'] * scale),
        'wk': pad_w(params['wk']),         'bk': pad_b(params['bk']),
        'wv': pad_w(params['wv']),         'bv': pad_b(params['bv']),
    }


# -------------------------- pure-JAX reference ---------------------------------
def self_attention_reference(query, key, value, params):
    N, C, H, W = query.shape
    L = H * W

    def conv1x1(x, w, b):                     # x: (N, C, L)
        return jnp.einsum('oc,ncl->nol', w, x) + b[None]

    xq = query.reshape(N, C, L)
    xk = key.reshape(N, C, L)
    xv = value.reshape(N, C, L)
    q = conv1x1(xq, params['wq'], params['bq'])
    k = conv1x1(xk, params['wk'], params['bk'])
    v = conv1x1(xv, params['wv'], params['bv'])
    attn = jnp.einsum('nci,ncj->nij', k, q) / math.sqrt(C)
    attn = jax.nn.softmax(attn, axis=1)
    out = jnp.einsum('nci,nij->ncj', v, attn)
    return query + out.reshape(N, C, H, W)


# --------------------------------- main ----------------------------------------
if __name__ == "__main__":
    root = jax.random.PRNGKey(0)
    kq, kk, kv, kp = jax.random.split(root, 4)

    N, C, H, W = 2, 4, 16, 16
    query = jax.random.normal(kq, (N, C, H, W), jnp.float32)
    key_in = jax.random.normal(kk, (N, C, H, W), jnp.float32)
    value = jax.random.normal(kv, (N, C, H, W), jnp.float32)

    raw_params = init_params(kp, C)
    params = prepare_params(raw_params, C)     # one-time: scale fold + pad

    fwd = jax.jit(self_attention_forward)
    out = jax.block_until_ready(fwd(query, key_in, value, params))

    assert out.shape == (N, C, H, W), out.shape
    assert out.dtype == jnp.float32
    assert bool(jnp.all(jnp.isfinite(out)))

    ref = self_attention_reference(query, key_in, value, raw_params)
    # tolerance covers the EUP approx-reciprocal applied to the (C, L) output
    assert bool(jnp.allclose(out, ref, atol=2e-3, rtol=2e-3)), \
        float(jnp.max(jnp.abs(out - ref)))

    print("KERNEL_OK")
</pallas_src>

<mosaic_0001>
module attributes {stable_mosaic.version = 11 : i64} {
  func.func @kernel(%arg0: i32, %arg1: memref<1x8x256xf32, #tpu.memory_space<vmem>>, %arg2: memref<1x8x256xf32, #tpu.memory_space<vmem>>, %arg3: memref<1x8x256xf32, #tpu.memory_space<vmem>>, %arg4: memref<8x8xf32, #tpu.memory_space<vmem>>, %arg5: memref<8x1xf32, #tpu.memory_space<vmem>>, %arg6: memref<8x8xf32, #tpu.memory_space<vmem>>, %arg7: memref<8x1xf32, #tpu.memory_space<vmem>>, %arg8: memref<8x8xf32, #tpu.memory_space<vmem>>, %arg9: memref<8x1xf32, #tpu.memory_space<vmem>>, %arg10: memref<1x8x256xf32, #tpu.memory_space<vmem>>) attributes {dimension_semantics = [#tpu.dimension_semantics<parallel>], iteration_bounds = array<i64: 2>, scalar_prefetch = 0 : i64, scratch_operands = 0 : i64, tpu.core_type = #tpu.core_type<tc>, window_params = [{transform_indices = @transform_0, window_bounds = array<i64: 1, 8, 256>}, {transform_indices = @transform_1, window_bounds = array<i64: 1, 8, 256>}, {transform_indices = @transform_2, window_bounds = array<i64: 1, 8, 256>}, {pipeline_mode = #tpu.pipeline_mode<synchronous>, transform_indices = @transform_3, window_bounds = array<i64: 8, 8>}, {pipeline_mode = #tpu.pipeline_mode<synchronous>, transform_indices = @transform_4, window_bounds = array<i64: 8, 1>}, {pipeline_mode = #tpu.pipeline_mode<synchronous>, transform_indices = @transform_5, window_bounds = array<i64: 8, 8>}, {pipeline_mode = #tpu.pipeline_mode<synchronous>, transform_indices = @transform_6, window_bounds = array<i64: 8, 1>}, {pipeline_mode = #tpu.pipeline_mode<synchronous>, transform_indices = @transform_7, window_bounds = array<i64: 8, 8>}, {pipeline_mode = #tpu.pipeline_mode<synchronous>, transform_indices = @transform_8, window_bounds = array<i64: 8, 1>}, {transform_indices = @transform_9, window_bounds = array<i64: 1, 8, 256>}]} {
    %c0 = arith.constant 0 : index
    %c0_0 = arith.constant 0 : index
    %0 = vector.load %arg4[%c0, %c0_0] : memref<8x8xf32, #tpu.memory_space<vmem>>, vector<8x8xf32>
    %c0_1 = arith.constant 0 : index
    %c0_2 = arith.constant 0 : index
    %1 = vector.load %arg5[%c0_1, %c0_2] : memref<8x1xf32, #tpu.memory_space<vmem>>, vector<8x1xf32>
    %c0_3 = arith.constant 0 : index
    %c0_4 = arith.constant 0 : index
    %2 = vector.load %arg6[%c0_3, %c0_4] : memref<8x8xf32, #tpu.memory_space<vmem>>, vector<8x8xf32>
    %c0_5 = arith.constant 0 : index
    %c0_6 = arith.constant 0 : index
    %3 = vector.load %arg7[%c0_5, %c0_6] : memref<8x1xf32, #tpu.memory_space<vmem>>, vector<8x1xf32>
    %c0_7 = arith.constant 0 : index
    %c0_8 = arith.constant 0 : index
    %4 = vector.load %arg8[%c0_7, %c0_8] : memref<8x8xf32, #tpu.memory_space<vmem>>, vector<8x8xf32>
    %c0_9 = arith.constant 0 : index
    %c0_10 = arith.constant 0 : index
    %5 = vector.load %arg9[%c0_9, %c0_10] : memref<8x1xf32, #tpu.memory_space<vmem>>, vector<8x1xf32>
    %c0_11 = arith.constant 0 : index
    %c0_12 = arith.constant 0 : index
    %c0_13 = arith.constant 0 : index
    %6 = vector.load %arg1[%c0_11, %c0_12, %c0_13] : memref<1x8x256xf32, #tpu.memory_space<vmem>>, vector<1x8x256xf32>
    %7 = vector.shape_cast %6 : vector<1x8x256xf32> to vector<8x256xf32>
    %c0_14 = arith.constant 0 : index
    %c0_15 = arith.constant 0 : index
    %c0_16 = arith.constant 0 : index
    %8 = vector.load %arg2[%c0_14, %c0_15, %c0_16] : memref<1x8x256xf32, #tpu.memory_space<vmem>>, vector<1x8x256xf32>
    %9 = vector.shape_cast %8 : vector<1x8x256xf32> to vector<8x256xf32>
    %c0_17 = arith.constant 0 : index
    %c0_18 = arith.constant 0 : index
    %c0_19 = arith.constant 0 : index
    %10 = vector.load %arg3[%c0_17, %c0_18, %c0_19] : memref<1x8x256xf32, #tpu.memory_space<vmem>>, vector<1x8x256xf32>
    %11 = vector.shape_cast %10 : vector<1x8x256xf32> to vector<8x256xf32>
    %cst = arith.constant dense<0.000000e+00> : vector<8x256xf32>
    %12 = tpu.matmul %0, %7, %cst {dimension_numbers = #tpu.dot_dimension_numbers<[1], [0], [0], [1], [0, 0, 1, 1], [], []>} : vector<8x8xf32>, vector<8x256xf32>, vector<8x256xf32> -> vector<8x256xf32>
    %13 = vector.broadcast %1 : vector<8x1xf32> to vector<8x256xf32>
    %14 = arith.addf %12, %13 : vector<8x256xf32>
    %cst_20 = arith.constant dense<0.000000e+00> : vector<8x256xf32>
    %15 = tpu.matmul %2, %9, %cst_20 {dimension_numbers = #tpu.dot_dimension_numbers<[1], [0], [0], [1], [0, 0, 1, 1], [], []>} : vector<8x8xf32>, vector<8x256xf32>, vector<8x256xf32> -> vector<8x256xf32>
    %16 = vector.broadcast %3 : vector<8x1xf32> to vector<8x256xf32>
    %17 = arith.addf %15, %16 : vector<8x256xf32>
    %cst_21 = arith.constant dense<0.000000e+00> : vector<8x256xf32>
    %18 = tpu.matmul %4, %11, %cst_21 {dimension_numbers = #tpu.dot_dimension_numbers<[1], [0], [0], [1], [0, 0, 1, 1], [], []>} : vector<8x8xf32>, vector<8x256xf32>, vector<8x256xf32> -> vector<8x256xf32>
    %19 = vector.broadcast %5 : vector<8x1xf32> to vector<8x256xf32>
    %20 = arith.addf %18, %19 : vector<8x256xf32>
    %cst_22 = arith.constant dense<0.000000e+00> : vector<256x256xf32>
    %21 = tpu.matmul %17, %14, %cst_22 {dimension_numbers = #tpu.dot_dimension_numbers<[0], [0], [1], [1], [0, 1, 1, 1], [], []>} : vector<8x256xf32>, vector<8x256xf32>, vector<256x256xf32> -> vector<256x256xf32>
    %cst_23 = arith.constant dense<0xFF800000> : vector<256xf32>
    %22 = vector.multi_reduction <maximumf>, %21, %cst_23 [0] : vector<256x256xf32> to vector<256xf32>
    %23 = vector.shape_cast %22 : vector<256xf32> to vector<1x256xf32>
    %24 = vector.broadcast %23 : vector<1x256xf32> to vector<256x256xf32>
    %25 = arith.subf %21, %24 : vector<256x256xf32>
    %26 = math.exp %25 : vector<256x256xf32>
    %cst_24 = arith.constant dense<0.000000e+00> : vector<256xf32>
    %27 = vector.multi_reduction <add>, %26, %cst_24 [0] : vector<256x256xf32> to vector<256xf32>
    %28 = vector.shape_cast %27 : vector<256xf32> to vector<1x256xf32>
    %cst_25 = arith.constant dense<0.000000e+00> : vector<8x256xf32>
    %29 = tpu.matmul %20, %26, %cst_25 {dimension_numbers = #tpu.dot_dimension_numbers<[1], [0], [0], [1], [0, 0, 1, 1], [], []>} : vector<8x256xf32>, vector<256x256xf32>, vector<8x256xf32> -> vector<8x256xf32>
    %30 = tpu.reciprocal %28 {approx = true} : vector<1x256xf32> -> vector<1x256xf32>
    %31 = vector.broadcast %30 : vector<1x256xf32> to vector<8x256xf32>
    %32 = arith.mulf %29, %31 : vector<8x256xf32>
    %33 = arith.addf %7, %32 : vector<8x256xf32>
    %c0_26 = arith.constant 0 : index
    %c0_27 = arith.constant 0 : index
    %c0_28 = arith.constant 0 : index
    %34 = vector.load %arg10[%c0_26, %c0_27, %c0_28] : memref<1x8x256xf32, #tpu.memory_space<vmem>>, vector<1x8x256xf32>
    %35 = vector.shape_cast %34 : vector<1x8x256xf32> to vector<8x256xf32>
    %36 = vector.shape_cast %33 : vector<8x256xf32> to vector<1x8x256xf32>
    tpu.vector_store %arg10[%c0_26, %c0_27, %c0_28], %36 {strides = array<i32>} : memref<1x8x256xf32, #tpu.memory_space<vmem>>, vector<1x8x256xf32>,
    return
  }
  func.func @transform_0(%arg0: i32) -> (i32, i32, i32) {
    %c0_i32 = arith.constant 0 : i32
    %c0_i32_0 = arith.constant 0 : i32
    %c0_i32_1 = arith.constant 0 : i32
    return %arg0, %c0_i32, %c0_i32_0 : i32, i32, i32
  }
  func.func @transform_1(%arg0: i32) -> (i32, i32, i32) {
    %c0_i32 = arith.constant 0 : i32
    %c0_i32_0 = arith.constant 0 : i32
    %c0_i32_1 = arith.constant 0 : i32
    return %arg0, %c0_i32, %c0_i32_0 : i32, i32, i32
  }
  func.func @transform_2(%arg0: i32) -> (i32, i32, i32) {
    %c0_i32 = arith.constant 0 : i32
    %c0_i32_0 = arith.constant 0 : i32
    %c0_i32_1 = arith.constant 0 : i32
    return %arg0, %c0_i32, %c0_i32_0 : i32, i32, i32
  }
  func.func @transform_3(%arg0: i32) -> (i32, i32) {
    %c0_i32 = arith.constant 0 : i32
    %c0_i32_0 = arith.constant 0 : i32
    %c0_i32_1 = arith.constant 0 : i32
    return %c0_i32, %c0_i32_0 : i32, i32
  }
  func.func @transform_4(%arg0: i32) -> (i32, i32) {
    %c0_i32 = arith.constant 0 : i32
    %c0_i32_0 = arith.constant 0 : i32
    %c0_i32_1 = arith.constant 0 : i32
    return %c0_i32, %c0_i32_0 : i32, i32
  }
  func.func @transform_5(%arg0: i32) -> (i32, i32) {
    %c0_i32 = arith.constant 0 : i32
    %c0_i32_0 = arith.constant 0 : i32
    %c0_i32_1 = arith.constant 0 : i32
    return %c0_i32, %c0_i32_0 : i32, i32
  }
  func.func @transform_6(%arg0: i32) -> (i32, i32) {
    %c0_i32 = arith.constant 0 : i32
    %c0_i32_0 = arith.constant 0 : i32
    %c0_i32_1 = arith.constant 0 : i32
    return %c0_i32, %c0_i32_0 : i32, i32
  }
  func.func @transform_7(%arg0: i32) -> (i32, i32) {
    %c0_i32 = arith.constant 0 : i32
    %c0_i32_0 = arith.constant 0 : i32
    %c0_i32_1 = arith.constant 0 : i32
    return %c0_i32, %c0_i32_0 : i32, i32
  }
  func.func @transform_8(%arg0: i32) -> (i32, i32) {
    %c0_i32 = arith.constant 0 : i32
    %c0_i32_0 = arith.constant 0 : i32
    %c0_i32_1 = arith.constant 0 : i32
    return %c0_i32, %c0_i32_0 : i32, i32
  }
  func.func @transform_9(%arg0: i32) -> (i32, i32, i32) {
    %c0_i32 = arith.constant 0 : i32
    %c0_i32_0 = arith.constant 0 : i32
    %c0_i32_1 = arith.constant 0 : i32
    return %arg0, %c0_i32, %c0_i32_0 : i32, i32, i32
  }
}

</mosaic_0001>

<llo_original>
// kernel: self_attention_forward.1
$region0: #{self_attention_forward.1}
  #allocation0 [shape = 'u32[]', space=smem, size = 0x4, offset = 0x4, fixed_abs, tag = 'smem constant byte address 0x4 - core index']
  #allocation1 [shape = 'u32[144,128]{1,0:T(1,128)}', space=vmem, size = 0x12000, scoped, tag = 'internal scratch']
  %s0 = inlined_call_operand.vmem [shape: f32[2,8,256], index: 0, kind: input, shape index: {}]
  %s1 = inlined_call_operand.vmem [shape: f32[2,8,256], index: 1, kind: input, shape index: {}]
  %s2 = inlined_call_operand.vmem [shape: f32[2,8,256], index: 2, kind: input, shape index: {}]
  %s3 = inlined_call_operand.vmem [shape: f32[8,8], index: 3, kind: input, shape index: {}]
  %s4 = inlined_call_operand.vmem [shape: f32[8,1], index: 4, kind: input, shape index: {}]
  %s5 = inlined_call_operand.vmem [shape: f32[8,8], index: 5, kind: input, shape index: {}]
  %s6 = inlined_call_operand.vmem [shape: f32[8,1], index: 6, kind: input, shape index: {}]
  %s7 = inlined_call_operand.vmem [shape: f32[8,8], index: 7, kind: input, shape index: {}]
  %s8 = inlined_call_operand.vmem [shape: f32[8,1], index: 8, kind: input, shape index: {}]
  %s9 = inlined_call_operand.vmem [shape: f32[2,8,256], index: 9, kind: output, shape index: {}]
  %s10 = sld [smem:[#allocation0]]
  $region69: #{self_attention_forward.1} parent=0
    _
  %s12 = ssub.s32 1, %s10
  %s13 = scalar_select 0, %s12, %s10
  loop: start=0, step=1, limit=4
  $region2: #{self_attention_forward.1} parent=0 // loop_pre_header
    _
  $region3: #{self_attention_forward.1} parent=0 // loop_header
    %s15 = sphi 0, %s19
    %p16 = scmp.ge.s32.totalorder %s15, 4
    %s25 = sphi 0, %s27
    %s28 = sphi 0, %s25
    %s29 = sphi 0, %s28
    %s45 = sphi 0, %s29
    %s51 = sphi 0, %s53
    %s54 = sphi 0, %s51
    %s55 = sphi 0, %s54
    %s71 = sphi 0, %s55
    %s77 = sphi 0, %s79
    %s80 = sphi 0, %s77
    %s81 = sphi 0, %s80
    %s97 = sphi 0, %s81
    %s101 = sphi 0, %s101
    %s103 = sphi 0, %s101
    %s104 = sphi 0, %s103
    %s118 = sphi 0, %s104
    %s122 = sphi 0, %s122
    %s124 = sphi 0, %s122
    %s125 = sphi 0, %s124
    %s139 = sphi 0, %s125
    %s143 = sphi 0, %s143
    %s145 = sphi 0, %s143
    %s146 = sphi 0, %s145
    %s160 = sphi 0, %s146
    %s164 = sphi 0, %s164
    %s166 = sphi 0, %s164
    %s167 = sphi 0, %s166
    %s181 = sphi 0, %s167
    %s185 = sphi 0, %s185
    %s187 = sphi 0, %s185
    %s188 = sphi 0, %s187
    %s202 = sphi 0, %s188
    %s206 = sphi 0, %s206
    %s208 = sphi 0, %s206
    %s209 = sphi 0, %s208
    %s223 = sphi 0, %s209
    %s229 = sphi 0, %s231
    %s232 = sphi 0, %s229
    %s233 = sphi 0, %s232
    %s249 = sphi 0, %s233
  $region4: #{self_attention_forward.1} parent=0 // loop_header_branch
    %18 = sbr.rel (%p16) target = $region8
  $region5: #{self_attention_forward.1} parent=0 // loop_body
    %s20 = ssub.s32 %s15, 1
    %s21 = ssub.s32 %s15, 2
    %s22 = sadd.s32 %s15, 1
    %s23 = ssub.s32 %s15, %s22
    %p24 = scmp.eq.s32.totalorder %s23, 0
    %s26 = sadd.s32 %s25, 1
    %s27 = scalar_select %p24, %s25, %s26
    %p30 = pneg %p24
    %p31 = scmp.eq.s32.totalorder %s15, 1
    %p32 = por %p30, %p31
    %p33 = scmp.ne.s32.totalorder %s25, %s28
    %p34 = scmp.eq.s32.totalorder %s15, 0
    %p35 = por %p33, %p34
    %p36 = scmp.ne.s32.totalorder %s25, %s28
    %p37 = scmp.eq.s32.totalorder %s20, 1
    %p38 = por %p36, %p37
    %p39 = scmp.ne.s32.totalorder %s28, %s29
    %p40 = scmp.eq.s32.totalorder %s20, 0
    %p41 = por %p39, %p40
    %p42 = scmp.ne.s32.totalorder %s28, %s29
    %p43 = scmp.eq.s32.totalorder %s21, 1
    %p44 = por %p42, %p43
    %p46 = scmp.ne.s32.totalorder %s29, %s45
    %p47 = scmp.eq.s32.totalorder %s21, 0
    %p48 = por %p46, %p47
    %s49 = ssub.s32 %s15, %s22
    %p50 = scmp.eq.s32.totalorder %s49, 0
    %s52 = sadd.s32 %s51, 1
    %s53 = scalar_select %p50, %s51, %s52
    %p56 = pneg %p50
    %p57 = scmp.eq.s32.totalorder %s15, 1
    %p58 = por %p56, %p57
    %p59 = scmp.ne.s32.totalorder %s51, %s54
    %p60 = scmp.eq.s32.totalorder %s15, 0
    %p61 = por %p59, %p60
    %p62 = scmp.ne.s32.totalorder %s51, %s54
    %p63 = scmp.eq.s32.totalorder %s20, 1
    %p64 = por %p62, %p63
    %p65 = scmp.ne.s32.totalorder %s54, %s55
    %p66 = scmp.eq.s32.totalorder %s20, 0
    %p67 = por %p65, %p66
    %p68 = scmp.ne.s32.totalorder %s54, %s55
    %p69 = scmp.eq.s32.totalorder %s21, 1
    %p70 = por %p68, %p69
    %p72 = scmp.ne.s32.totalorder %s55, %s71
    %p73 = scmp.eq.s32.totalorder %s21, 0
    %p74 = por %p72, %p73
    %s75 = ssub.s32 %s15, %s22
    %p76 = scmp.eq.s32.totalorder %s75, 0
    %s78 = sadd.s32 %s77, 1
    %s79 = scalar_select %p76, %s77, %s78
    %p82 = pneg %p76
    %p83 = scmp.eq.s32.totalorder %s15, 1
    %p84 = por %p82, %p83
    %p85 = scmp.ne.s32.totalorder %s77, %s80
    %p86 = scmp.eq.s32.totalorder %s15, 0
    %p87 = por %p85, %p86
    %p88 = scmp.ne.s32.totalorder %s77, %s80
    %p89 = scmp.eq.s32.totalorder %s20, 1
    %p90 = por %p88, %p89
    %p91 = scmp.ne.s32.totalorder %s80, %s81
    %p92 = scmp.eq.s32.totalorder %s20, 0
    %p93 = por %p91, %p92
    %p94 = scmp.ne.s32.totalorder %s80, %s81
    %p95 = scmp.eq.s32.totalorder %s21, 1
    %p96 = por %p94, %p95
    %p98 = scmp.ne.s32.totalorder %s81, %s97
    %p99 = scmp.eq.s32.totalorder %s21, 0
    %p100 = por %p98, %p99
    %s102 = sadd.s32 %s101, 1
    %p105 = scmp.eq.s32.totalorder %s15, 1
    %p106 = scmp.ne.s32.totalorder %s101, %s103
    %p107 = scmp.eq.s32.totalorder %s15, 0
    %p108 = por %p106, %p107
    %p109 = scmp.ne.s32.totalorder %s101, %s103
    %p110 = scmp.eq.s32.totalorder %s20, 1
    %p111 = por %p109, %p110
    %p112 = scmp.ne.s32.totalorder %s103, %s104
    %p113 = scmp.eq.s32.totalorder %s20, 0
    %p114 = por %p112, %p113
    %p115 = scmp.ne.s32.totalorder %s103, %s104
    %p116 = scmp.eq.s32.totalorder %s21, 1
    %p117 = por %p115, %p116
    %p119 = scmp.ne.s32.totalorder %s104, %s118
    %p120 = scmp.eq.s32.totalorder %s21, 0
    %p121 = por %p119, %p120
    %s123 = sadd.s32 %s122, 1
    %p126 = scmp.eq.s32.totalorder %s15, 1
    %p127 = scmp.ne.s32.totalorder %s122, %s124
    %p128 = scmp.eq.s32.totalorder %s15, 0
    %p129 = por %p127, %p128
    %p130 = scmp.ne.s32.totalorder %s122, %s124
    %p131 = scmp.eq.s32.totalorder %s20, 1
    %p132 = por %p130, %p131
    %p133 = scmp.ne.s32.totalorder %s124, %s125
    %p134 = scmp.eq.s32.totalorder %s20, 0
    %p135 = por %p133, %p134
    %p136 = scmp.ne.s32.totalorder %s124, %s125
    %p137 = scmp.eq.s32.totalorder %s21, 1
    %p138 = por %p136, %p137
    %p140 = scmp.ne.s32.totalorder %s125, %s139
    %p141 = scmp.eq.s32.totalorder %s21, 0
    %p142 = por %p140, %p141
    %s144 = sadd.s32 %s143, 1
    %p147 = scmp.eq.s32.totalorder %s15, 1
    %p148 = scmp.ne.s32.totalorder %s143, %s145
    %p149 = scmp.eq.s32.totalorder %s15, 0
    %p150 = por %p148, %p149
    %p151 = scmp.ne.s32.totalorder %s143, %s145
    %p152 = scmp.eq.s32.totalorder %s20, 1
    %p153 = por %p151, %p152
    %p154 = scmp.ne.s32.totalorder %s145, %s146
    %p155 = scmp.eq.s32.totalorder %s20, 0
    %p156 = por %p154, %p155
    %p157 = scmp.ne.s32.totalorder %s145, %s146
    %p158 = scmp.eq.s32.totalorder %s21, 1
    %p159 = por %p157, %p158
    %p161 = scmp.ne.s32.totalorder %s146, %s160
    %p162 = scmp.eq.s32.totalorder %s21, 0
    %p163 = por %p161, %p162
    %s165 = sadd.s32 %s164, 1
    %p168 = scmp.eq.s32.totalorder %s15, 1
    %p169 = scmp.ne.s32.totalorder %s164, %s166
    %p170 = scmp.eq.s32.totalorder %s15, 0
    %p171 = por %p169, %p170
    %p172 = scmp.ne.s32.totalorder %s164, %s166
    %p173 = scmp.eq.s32.totalorder %s20, 1
    %p174 = por %p172, %p173
    %p175 = scmp.ne.s32.totalorder %s166, %s167
    %p176 = scmp.eq.s32.totalorder %s20, 0
    %p177 = por %p175, %p176
    %p178 = scmp.ne.s32.totalorder %s166, %s167
    %p179 = scmp.eq.s32.totalorder %s21, 1
    %p180 = por %p178, %p179
    %p182 = scmp.ne.s32.totalorder %s167, %s181
    %p183 = scmp.eq.s32.totalorder %s21, 0
    %p184 = por %p182, %p183
    %s186 = sadd.s32 %s185, 1
    %p189 = scmp.eq.s32.totalorder %s15, 1
    %p190 = scmp.ne.s32.totalorder %s185, %s187
    %p191 = scmp.eq.s32.totalorder %s15, 0
    %p192 = por %p190, %p191
    %p193 = scmp.ne.s32.totalorder %s185, %s187
    %p194 = scmp.eq.s32.totalorder %s20, 1
    %p195 = por %p193, %p194
    %p196 = scmp.ne.s32.totalorder %s187, %s188
    %p197 = scmp.eq.s32.totalorder %s20, 0
    %p198 = por %p196, %p197
    %p199 = scmp.ne.s32.totalorder %s187, %s188
    %p200 = scmp.eq.s32.totalorder %s21, 1
    %p201 = por %p199, %p200
    %p203 = scmp.ne.s32.totalorder %s188, %s202
    %p204 = scmp.eq.s32.totalorder %s21, 0
    %p205 = por %p203, %p204
    %s207 = sadd.s32 %s206, 1
    %p210 = scmp.eq.s32.totalorder %s15, 1
    %p211 = scmp.ne.s32.totalorder %s206, %s208
    %p212 = scmp.eq.s32.totalorder %s15, 0
    %p213 = por %p211, %p212
    %p214 = scmp.ne.s32.totalorder %s206, %s208
    %p215 = scmp.eq.s32.totalorder %s20, 1
    %p216 = por %p214, %p215
    %p217 = scmp.ne.s32.totalorder %s208, %s209
    %p218 = scmp.eq.s32.totalorder %s20, 0
    %p219 = por %p217, %p218
    %p220 = scmp.ne.s32.totalorder %s208, %s209
    %p221 = scmp.eq.s32.totalorder %s21, 1
    %p222 = por %p220, %p221
    %p224 = scmp.ne.s32.totalorder %s209, %s223
    %p225 = scmp.eq.s32.totalorder %s21, 0
    %p226 = por %p224, %p225
    %s227 = ssub.s32 %s15, %s22
    %p228 = scmp.eq.s32.totalorder %s227, 0
    %s230 = sadd.s32 %s229, 1
    %s231 = scalar_select %p228, %s229, %s230
    %p234 = pneg %p228
    %p235 = scmp.eq.s32.totalorder %s15, 1
    %p236 = por %p234, %p235
    %p237 = scmp.ne.s32.totalorder %s229, %s232
    %p238 = scmp.eq.s32.totalorder %s15, 0
    %p239 = por %p237, %p238
    %p240 = scmp.ne.s32.totalorder %s229, %s232
    %p241 = scmp.eq.s32.totalorder %s20, 1
    %p242 = por %p240, %p241
    %p243 = scmp.ne.s32.totalorder %s232, %s233
    %p244 = scmp.eq.s32.totalorder %s20, 0
    %p245 = por %p243, %p244
    %p246 = scmp.ne.s32.totalorder %s232, %s233
    %p247 = scmp.eq.s32.totalorder %s21, 1
    %p248 = por %p246, %p247
    %p250 = scmp.ne.s32.totalorder %s233, %s249
    %p251 = scmp.eq.s32.totalorder %s21, 0
    %p252 = por %p250, %p251
    %p253 = scmp.le.s32.totalorder 1, %s15
    %p254 = scmp.lt.s32.totalorder %s15, 3
    %p255 = pnand %p253, %p254
    %p256 = pneg %p255
    // Predicated region
    $region9: #{self_attention_forward.1} parent=5 // pred_check
      _
    $region10: #{self_attention_forward.1} parent=5 // pred_check_branch
      %258 = sbr.rel (%p255) target = $region12
    $region11: #{self_attention_forward.1} parent=5 // pred_region
      %s259 = ssub.s32 %s15, 1
      // Predicated region
      $region13: #{self_attention_forward.1} parent=11 // pred_check
        %p260 = pneg %p114
      $region14: #{self_attention_forward.1} parent=11 // pred_check_branch
        %262 = sbr.rel (%p260) target = $region16
      $region15: #{self_attention_forward.1} parent=11 // pred_region
        _
      $region16: #{self_attention_forward.1} parent=11 // pred_fallthru
        _
      // Predicated region
      $region17: #{self_attention_forward.1} parent=11 // pred_check
        %p263 = pneg %p135
      $region18: #{self_attention_forward.1} parent=11 // pred_check_branch
        %265 = sbr.rel (%p263) target = $region20
      $region19: #{self_attention_forward.1} parent=11 // pred_region
        _
      $region20: #{self_attention_forward.1} parent=11 // pred_fallthru
        _
      // Predicated region
      $region21: #{self_attention_forward.1} parent=11 // pred_check
        %p266 = pneg %p156
      $region22: #{self_attention_forward.1} parent=11 // pred_check_branch
        %268 = sbr.rel (%p266) target = $region24
      $region23: #{self_attention_forward.1} parent=11 // pred_region
        _
      $region24: #{self_attention_forward.1} parent=11 // pred_fallthru
        _
      // Predicated region
      $region25: #{self_attention_forward.1} parent=11 // pred_check
        %p269 = pneg %p177
      $region26: #{self_attention_forward.1} parent=11 // pred_check_branch
        %271 = sbr.rel (%p269) target = $region28
      $region27: #{self_attention_forward.1} parent=11 // pred_region
        _
      $region28: #{self_attention_forward.1} parent=11 // pred_fallthru
        _
      // Predicated region
      $region29: #{self_attention_forward.1} parent=11 // pred_check
        %p272 = pneg %p198
      $region30: #{self_attention_forward.1} parent=11 // pred_check_branch
        %274 = sbr.rel (%p272) target = $region32
      $region31: #{self_attention_forward.1} parent=11 // pred_region
        _
      $region32: #{self_attention_forward.1} parent=11 // pred_fallthru
        _
      // Predicated region
      $region33: #{self_attention_forward.1} parent=11 // pred_check
        %p275 = pneg %p219
      $region34: #{self_attention_forward.1} parent=11 // pred_check_branch
        %277 = sbr.rel (%p275) target = $region36
      $region35: #{self_attention_forward.1} parent=11 // pred_region
        _
      $region36: #{self_attention_forward.1} parent=11 // pred_fallthru
        _
    $region12: #{self_attention_forward.1} parent=5 // pred_fallthru
      _
    %p278 = scmp.lt.s32.totalorder %s15, 2
    // Predicated region
    $region37: #{self_attention_forward.1} parent=5 // pred_check
      %p279 = pneg %p278
    $region38: #{self_attention_forward.1} parent=5 // pred_check_branch
      %281 = sbr.rel (%p279) target = $region40
    $region39: #{self_attention_forward.1} parent=5 // pred_region
      // Predicated region
      $region41: #{self_attention_forward.1} parent=39 // pred_check
        %p282 = pneg %p35
      $region42: #{self_attention_forward.1} parent=39 // pred_check_branch
        %284 = sbr.rel (%p282) target = $region44
      $region43: #{self_attention_forward.1} parent=39 // pred_region
        %p285 = scmp.lt.s32.totalorder %s15, 1
        %s286 = scalar_select %p285, %s15, 1
        %s287 = smul.addr %s286, 2
        %s288 = smul.addr %s287, 8
        %s289 = scalar_lea.vmem %s0, %s288
      $region44: #{self_attention_forward.1} parent=39 // pred_fallthru
        _
      // Predicated region
      $region45: #{self_attention_forward.1} parent=39 // pred_check
        %p290 = pneg %p61
      $region46: #{self_attention_forward.1} parent=39 // pred_check_branch
        %292 = sbr.rel (%p290) target = $region48
      $region47: #{self_attention_forward.1} parent=39 // pred_region
        %p293 = scmp.lt.s32.totalorder %s15, 1
        %s294 = scalar_select %p293, %s15, 1
        %s295 = smul.addr %s294, 2
        %s296 = smul.addr %s295, 8
        %s297 = scalar_lea.vmem %s1, %s296
      $region48: #{self_attention_forward.1} parent=39 // pred_fallthru
        _
      // Predicated region
      $region49: #{self_attention_forward.1} parent=39 // pred_check
        %p298 = pneg %p87
      $region50: #{self_attention_forward.1} parent=39 // pred_check_branch
        %300 = sbr.rel (%p298) target = $region52
      $region51: #{self_attention_forward.1} parent=39 // pred_region
        %p301 = scmp.lt.s32.totalorder %s15, 1
        %s302 = scalar_select %p301, %s15, 1
        %s303 = smul.addr %s302, 2
        %s304 = smul.addr %s303, 8
        %s305 = scalar_lea.vmem %s2, %s304
      $region52: #{self_attention_forward.1} parent=39 // pred_fallthru
        _
    $region40: #{self_attention_forward.1} parent=5 // pred_fallthru
      _
    %p306 = scmp.le.s32.totalorder 1, %s15
    %p307 = scmp.lt.s32.totalorder %s15, 3
    %p308 = pnand %p306, %p307
    %p309 = pneg %p308
    // Predicated region
    $region53: #{self_attention_forward.1} parent=5 // pred_check
      _
    $region54: #{self_attention_forward.1} parent=5 // pred_check_branch
      %311 = sbr.rel (%p308) target = $region56
    $region55: #{self_attention_forward.1} parent=5 // pred_region
      %s312 = ssub.s32 %s15, 1
      %p313 = scmp.lt.s32.totalorder %s20, 1
      %s314 = scalar_select %p313, %s20, 1
      %s315 = smul.addr %s314, 2
      %s316 = smul.addr %s315, 8
      %s317 = scalar_lea.vmem %s0, %s316
      %p318 = pneg %p41
      %p319 = pneg %p38
      %p320 = scmp.lt.s32.totalorder %s20, 1
      %s321 = scalar_select %p320, %s20, 1
      %s322 = smul.addr %s321, 2
      %s323 = smul.addr %s322, 8
      %s324 = scalar_lea.vmem %s1, %s323
      %p325 = pneg %p67
      %p326 = pneg %p64
      %p327 = scmp.lt.s32.totalorder %s20, 1
      %s328 = scalar_select %p327, %s20, 1
      %s329 = smul.addr %s328, 2
      %s330 = smul.addr %s329, 8
      %s331 = scalar_lea.vmem %s2, %s330
      %p332 = pneg %p93
      %p333 = pneg %p90
      %p334 = pneg %p114
      %p335 = pneg %p111
      %p336 = pneg %p135
      %p337 = pneg %p132
      %p338 = pneg %p156
      %p339 = pneg %p153
      %p340 = pneg %p177
      %p341 = pneg %p174
      %p342 = pneg %p198
      %p343 = pneg %p195
      %p344 = pneg %p219
      %p345 = pneg %p216
      %p346 = pneg %p245
      %p347 = pneg %p242
      %p348 = scmp.lt.s32.totalorder %s20, 1
      %s349 = scalar_select %p348, %s20, 1
      %s350 = smul.addr %s349, 2
      %s351 = smul.addr %s350, 8
      %s352 = scalar_lea.vmem %s9, %s351
      %p353 = scmp.lt.s32.totalorder %s20, 1
      %s354 = scalar_select %p353, %s20, 1
      %s355 = smul.addr %s354, 2
      %s356 = smul.addr %s355, 8
      %s357 = scalar_lea.vmem %s0, %s356
      %p358 = scmp.lt.s32.totalorder %s20, 1
      %s359 = scalar_select %p358, %s20, 1
      %s360 = smul.addr %s359, 2
      %s361 = smul.addr %s360, 8
      %s362 = scalar_lea.vmem %s1, %s361
      %p363 = scmp.lt.s32.totalorder %s20, 1
      %s364 = scalar_select %p363, %s20, 1
      %s365 = smul.addr %s364, 2
      %s366 = smul.addr %s365, 8
      %s367 = scalar_lea.vmem %s2, %s366
      %p368 = scmp.lt.s32.totalorder %s20, 1
      %s369 = scalar_select %p368, %s20, 1
      %s370 = smul.addr %s369, 2
      %s371 = smul.addr %s370, 8
      %s372 = scalar_lea.vmem %s9, %s371
      %v373 = vld [vmem:[%s3] sm:$0xff]
      %v374 = vld [vmem:[%s4] sm:$0xff]
      %v375 = vld [vmem:[%s5] sm:$0xff]
      %v376 = vld [vmem:[%s6] sm:$0xff]
      %v377 = vld [vmem:[%s7] sm:$0xff]
      %v378 = vld [vmem:[%s8] sm:$0xff]
      %v379 = vld [vmem:[%s357] sm:$0xff]
      %v380 = vld [vmem:[%s357 + $0x8] sm:$0xff]
      %v381 = vld [vmem:[%s362] sm:$0xff]
      %v382 = vld [vmem:[%s362 + $0x8] sm:$0xff]
      %v383 = vld [vmem:[%s367] sm:$0xff]
      %v384 = vld [vmem:[%s367 + $0x8] sm:$0xff]
      %386 = vset.pattern.permute.xlu0 0
      %387 = vperm.xlu0 %386, %v374
      %v388 = vpop.permute.xlu0 %387
      %vm390 = vcmask 64512
      %v392 = vsel %vm390, %v373, 0
      %394 = vmatprep.subr.mxu0 %v380
      %395 = vmatpush1.msra.mxu0 %v379
      %396 = vmatprep.subr.mxu0 0.0
      %397 = vmatpush1.msra.mxu0 0.0
      %398 = vmatprep.subr.mxu0 0.0
      %399 = vmatpush1.msra.mxu0 0.0
      %400 = vmatprep.subr.mxu0 0.0
      %401 = vmatpush1.msra.mxu0 0.0
      %402 = vmatprep.subr.mxu0 0.0
      %403 = vmatpush1.msra.mxu0 0.0
      %404 = vmatprep.subr.mxu0 0.0
      %405 = vmatpush1.msra.mxu0 0.0
      %406 = vmatprep.subr.mxu0 0.0
      %407 = vmatpush1.msra.mxu0 0.0
      %408 = vmatprep.subr.mxu0 0.0
      %409 = vmatpush1.msra.mxu0 0.0
      %410 = vmatprep.subr.mxu0 0.0
      %411 = vmatpush1.msra.mxu0 0.0
      %412 = vmatprep.subr.mxu0 0.0
      %413 = vmatpush1.msra.mxu0 0.0
      %414 = vmatprep.subr.mxu0 0.0
      %415 = vmatpush1.msra.mxu0 0.0
      %416 = vmatprep.subr.mxu0 0.0
      %417 = vmatpush1.msra.mxu0 0.0
      %418 = vmatprep.subr.mxu0 0.0
      %419 = vmatpush1.msra.mxu0 0.0
      %420 = vmatprep.subr.mxu0 0.0
      %421 = vmatpush1.msra.mxu0 0.0
      %422 = vmatprep.subr.mxu0 0.0
      %423 = vmatpush1.msra.mxu0 0.0
      %424 = vmatprep.subr.mxu0 0.0
      %425 = vmatpush1.msra.mxu0 0.0
      %426 = vmatprep.subr.mxu0 0.0
      %427 = vmatpush1.msra.mxu0 0.0
      %428 = vmatprep.subr.mxu0 0.0
      %429 = vmatpush1.msra.mxu0 0.0
      %430 = vmatprep.subr.mxu0 0.0
      %431 = vmatpush1.msra.mxu0 0.0
      %432 = vmatprep.subr.mxu0 0.0
      %433 = vmatpush1.msra.mxu0 0.0
      %434 = vmatprep.subr.mxu0 0.0
      %435 = vmatpush1.msra.mxu0 0.0
      %436 = vmatprep.subr.mxu0 0.0
      %437 = vmatpush1.msra.mxu0 0.0
      %438 = vmatprep.subr.mxu0 0.0
      %439 = vmatpush1.msra.mxu0 0.0
      %440 = vmatprep.subr.mxu0 0.0
      %441 = vmatpush1.msra.mxu0 0.0
      %442 = vmatprep.subr.mxu0 0.0
      %443 = vmatpush1.msra.mxu0 0.0
      %444 = vmatprep.subr.mxu0 0.0
      %445 = vmatpush1.msra.mxu0 0.0
      %446 = vmatprep.subr.mxu0 0.0
      %447 = vmatpush1.msra.mxu0 0.0
      %448 = vmatprep.subr.mxu0 0.0
      %449 = vmatpush1.msra.mxu0 0.0
      %450 = vmatprep.subr.mxu0 0.0
      %451 = vmatpush1.msra.mxu0 0.0
      %452 = vmatprep.subr.mxu0 0.0
      %453 = vmatpush1.msra.mxu0 0.0
      %454 = vmatprep.subr.mxu0 0.0
      %455 = vmatpush1.msra.mxu0 0.0
      %456 = vmatprep.subr.mxu0 0.0
      %457 = vmatpush1.msra.mxu0 0.0
      %458 = vmatprep.mubr.f32.mxu0 0.0
      %459 = vmatmul.mubr.f32.gmra.mrb[0].mxu0 %v392
      %v460 = vpop.f32.mrb[0].mxu0
      %v461 = vadd.f32 %v388, %v460
      %v462 = vpop.f32.mrb[0].mxu0
      %v463 = vadd.f32 %v388, %v462
      %464 = vdwg.mxu0
      %466 = vset.pattern.permute.xlu0 0
      %467 = vperm.xlu0 %466, %v376
      %v468 = vpop.permute.xlu0 %467
      %v471 = vsel %vm390, %v375, 0
      %473 = vmatprep.subr.mxu0 %v382
      %474 = vmatpush1.msra.mxu0 %v381
      %475 = vmatprep.subr.mxu0 0.0
      %476 = vmatpush1.msra.mxu0 0.0
      %477 = vmatprep.subr.mxu0 0.0
      %478 = vmatpush1.msra.mxu0 0.0
      %479 = vmatprep.subr.mxu0 0.0
      %480 = vmatpush1.msra.mxu0 0.0
      %481 = vmatprep.subr.mxu0 0.0
      %482 = vmatpush1.msra.mxu0 0.0
      %483 = vmatprep.subr.mxu0 0.0
      %484 = vmatpush1.msra.mxu0 0.0
      %485 = vmatprep.subr.mxu0 0.0
      %486 = vmatpush1.msra.mxu0 0.0
      %487 = vmatprep.subr.mxu0 0.0
      %488 = vmatpush1.msra.mxu0 0.0
      %489 = vmatprep.subr.mxu0 0.0
      %490 = vmatpush1.msra.mxu0 0.0
      %491 = vmatprep.subr.mxu0 0.0
      %492 = vmatpush1.msra.mxu0 0.0
      %493 = vmatprep.subr.mxu0 0.0
      %494 = vmatpush1.msra.mxu0 0.0
      %495 = vmatprep.subr.mxu0 0.0
      %496 = vmatpush1.msra.mxu0 0.0
      %497 = vmatprep.subr.mxu0 0.0
      %498 = vmatpush1.msra.mxu0 0.0
      %499 = vmatprep.subr.mxu0 0.0
      %500 = vmatpush1.msra.mxu0 0.0
      %501 = vmatprep.subr.mxu0 0.0
      %502 = vmatpush1.msra.mxu0 0.0
      %503 = vmatprep.subr.mxu0 0.0
      %504 = vmatpush1.msra.mxu0 0.0
      %505 = vmatprep.subr.mxu0 0.0
      %506 = vmatpush1.msra.mxu0 0.0
      %507 = vmatprep.subr.mxu0 0.0
      %508 = vmatpush1.msra.mxu0 0.0
      %509 = vmatprep.subr.mxu0 0.0
      %510 = vmatpush1.msra.mxu0 0.0
      %511 = vmatprep.subr.mxu0 0.0
      %512 = vmatpush1.msra.mxu0 0.0
      %513 = vmatprep.subr.mxu0 0.0
      %514 = vmatpush1.msra.mxu0 0.0
      %515 = vmatprep.subr.mxu0 0.0
      %516 = vmatpush1.msra.mxu0 0.0
      %517 = vmatprep.subr.mxu0 0.0
      %518 = vmatpush1.msra.mxu0 0.0
      %519 = vmatprep.subr.mxu0 0.0
      %520 = vmatpush1.msra.mxu0 0.0
      %521 = vmatprep.subr.mxu0 0.0
      %522 = vmatpush1.msra.mxu0 0.0
      %523 = vmatprep.subr.mxu0 0.0
      %524 = vmatpush1.msra.mxu0 0.0
      %525 = vmatprep.subr.mxu0 0.0
      %526 = vmatpush1.msra.mxu0 0.0
      %527 = vmatprep.subr.mxu0 0.0
      %528 = vmatpush1.msra.mxu0 0.0
      %529 = vmatprep.subr.mxu0 0.0
      %530 = vmatpush1.msra.mxu0 0.0
      %531 = vmatprep.subr.mxu0 0.0
      %532 = vmatpush1.msra.mxu0 0.0
      %533 = vmatprep.subr.mxu0 0.0
      %534 = vmatpush1.msra.mxu0 0.0
      %535 = vmatprep.subr.mxu0 0.0
      %536 = vmatpush1.msra.mxu0 0.0
      %537 = vmatprep.mubr.f32.mxu0 0.0
      %538 = vmatmul.mubr.f32.gmra.mrb[0].mxu0 %v471
      %v539 = vpop.f32.mrb[0].mxu0
      %v540 = vadd.f32 %v468, %v539
      %v541 = vpop.f32.mrb[0].mxu0
      %v542 = vadd.f32 %v468, %v541
      %543 = vdwg.mxu0
      %545 = vset.pattern.permute.xlu0 0
      %546 = vperm.xlu0 %545, %v378
      %v547 = vpop.permute.xlu0 %546
      %v550 = vsel %vm390, %v377, 0
      %552 = vmatprep.subr.mxu0 %v384
      %553 = vmatpush1.msra.mxu0 %v383
      %554 = vmatprep.subr.mxu0 0.0
      %555 = vmatpush1.msra.mxu0 0.0
      %556 = vmatprep.subr.mxu0 0.0
      %557 = vmatpush1.msra.mxu0 0.0
      %558 = vmatprep.subr.mxu0 0.0
      %559 = vmatpush1.msra.mxu0 0.0
      %560 = vmatprep.subr.mxu0 0.0
      %561 = vmatpush1.msra.mxu0 0.0
      %562 = vmatprep.subr.mxu0 0.0
      %563 = vmatpush1.msra.mxu0 0.0
      %564 = vmatprep.subr.mxu0 0.0
      %565 = vmatpush1.msra.mxu0 0.0
      %566 = vmatprep.subr.mxu0 0.0
      %567 = vmatpush1.msra.mxu0 0.0
      %568 = vmatprep.subr.mxu0 0.0
      %569 = vmatpush1.msra.mxu0 0.0
      %570 = vmatprep.subr.mxu0 0.0
      %571 = vmatpush1.msra.mxu0 0.0
      %572 = vmatprep.subr.mxu0 0.0
      %573 = vmatpush1.msra.mxu0 0.0
      %574 = vmatprep.subr.mxu0 0.0
      %575 = vmatpush1.msra.mxu0 0.0
      %576 = vmatprep.subr.mxu0 0.0
      %577 = vmatpush1.msra.mxu0 0.0
      %578 = vmatprep.subr.mxu0 0.0
      %579 = vmatpush1.msra.mxu0 0.0
      %580 = vmatprep.subr.mxu0 0.0
      %581 = vmatpush1.msra.mxu0 0.0
      %582 = vmatprep.subr.mxu0 0.0
      %583 = vmatpush1.msra.mxu0 0.0
      %584 = vmatprep.subr.mxu0 0.0
      %585 = vmatpush1.msra.mxu0 0.0
      %586 = vmatprep.subr.mxu0 0.0
      %587 = vmatpush1.msra.mxu0 0.0
      %588 = vmatprep.subr.mxu0 0.0
      %589 = vmatpush1.msra.mxu0 0.0
      %590 = vmatprep.subr.mxu0 0.0
      %591 = vmatpush1.msra.mxu0 0.0
      %592 = vmatprep.subr.mxu0 0.0
      %593 = vmatpush1.msra.mxu0 0.0
      %594 = vmatprep.subr.mxu0 0.0
      %595 = vmatpush1.msra.mxu0 0.0
      %596 = vmatprep.subr.mxu0 0.0
      %597 = vmatpush1.msra.mxu0 0.0
      %598 = vmatprep.subr.mxu0 0.0
      %599 = vmatpush1.msra.mxu0 0.0
      %600 = vmatprep.subr.mxu0 0.0
      %601 = vmatpush1.msra.mxu0 0.0
      %602 = vmatprep.subr.mxu0 0.0
      %603 = vmatpush1.msra.mxu0 0.0
      %604 = vmatprep.subr.mxu0 0.0
      %605 = vmatpush1.msra.mxu0 0.0
      %606 = vmatprep.subr.mxu0 0.0
      %607 = vmatpush1.msra.mxu0 0.0
      %608 = vmatprep.subr.mxu0 0.0
      %609 = vmatpush1.msra.mxu0 0.0
      %610 = vmatprep.subr.mxu0 0.0
      %611 = vmatpush1.msra.mxu0 0.0
      %612 = vmatprep.subr.mxu0 0.0
      %613 = vmatpush1.msra.mxu0 0.0
      %614 = vmatprep.subr.mxu0 0.0
      %615 = vmatpush1.msra.mxu0 0.0
      %616 = vmatprep.mubr.f32.mxu0 0.0
      %617 = vmatmul.mubr.f32.gmra.mrb[0].mxu0 %v550
      %v618 = vpop.f32.mrb[0].mxu0
      %v619 = vadd.f32 %v547, %v618
      %v620 = vpop.f32.mrb[0].mxu0
      %v621 = vadd.f32 %v547, %v620
      %622 = vdwg.mxu0
      %623 = vxpose.xlu0.b32.start [1/16] %v540, 128
      %624 = vxpose.xlu0.b32.cont [2/16] 0.0, 128
      %625 = vxpose.xlu0.b32.cont [3/16] 0.0, 128
      %626 = vxpose.xlu0.b32.cont [4/16] 0.0, 128
      %627 = vxpose.xlu0.b32.cont [5/16] 0.0, 128
      %628 = vxpose.xlu0.b32.cont [6/16] 0.0, 128
      %629 = vxpose.xlu0.b32.cont [7/16] 0.0, 128
      %630 = vxpose.xlu0.b32.cont [8/16] 0.0, 128
      %631 = vxpose.xlu0.b32.cont [9/16] 0.0, 128
      %632 = vxpose.xlu0.b32.cont [10/16] 0.0, 128
      %633 = vxpose.xlu0.b32.cont [11/16] 0.0, 128
      %634 = vxpose.xlu0.b32.cont [12/16] 0.0, 128
      %635 = vxpose.xlu0.b32.cont [13/16] 0.0, 128
      %636 = vxpose.xlu0.b32.cont [14/16] 0.0, 128
      %637 = vxpose.xlu0.b32.cont [15/16] 0.0, 128
      %638 = vxpose.xlu0.b32.end [16/16] 0.0, 128
      %v639 = vpop.trf.xlu0
      %v640 = vpop.trf.xlu0
      %v641 = vpop.trf.xlu0
      %v642 = vpop.trf.xlu0
      %v643 = vpop.trf.xlu0
      %v644 = vpop.trf.xlu0
      %v645 = vpop.trf.xlu0
      %v646 = vpop.trf.xlu0
      %v647 = vpop.trf.xlu0
      %v648 = vpop.trf.xlu0
      %v649 = vpop.trf.xlu0
      %v650 = vpop.trf.xlu0
      %v651 = vpop.trf.xlu0
      %v652 = vpop.trf.xlu0
      %v653 = vpop.trf.xlu0
      %v654 = vpop.trf.xlu0
      %655 = vxpose.xlu0.b32.start [1/16] %v542, 128
      %656 = vxpose.xlu0.b32.cont [2/16] 0.0, 128
      %657 = vxpose.xlu0.b32.cont [3/16] 0.0, 128
      %658 = vxpose.xlu0.b32.cont [4/16] 0.0, 128
      %659 = vxpose.xlu0.b32.cont [5/16] 0.0, 128
      %660 = vxpose.xlu0.b32.cont [6/16] 0.0, 128
      %661 = vxpose.xlu0.b32.cont [7/16] 0.0, 128
      %662 = vxpose.xlu0.b32.cont [8/16] 0.0, 128
      %663 = vxpose.xlu0.b32.cont [9/16] 0.0, 128
      %664 = vxpose.xlu0.b32.cont [10/16] 0.0, 128
      %665 = vxpose.xlu0.b32.cont [11/16] 0.0, 128
      %666 = vxpose.xlu0.b32.cont [12/16] 0.0, 128
      %667 = vxpose.xlu0.b32.cont [13/16] 0.0, 128
      %668 = vxpose.xlu0.b32.cont [14/16] 0.0, 128
      %669 = vxpose.xlu0.b32.cont [15/16] 0.0, 128
      %670 = vxpose.xlu0.b32.end [16/16] 0.0, 128
      %v671 = vpop.trf.xlu0
      %v672 = vpop.trf.xlu0
      %v673 = vpop.trf.xlu0
      %v674 = vpop.trf.xlu0
      %v675 = vpop.trf.xlu0
      %v676 = vpop.trf.xlu0
      %v677 = vpop.trf.xlu0
      %v678 = vpop.trf.xlu0
      %v679 = vpop.trf.xlu0
      %v680 = vpop.trf.xlu0
      %v681 = vpop.trf.xlu0
      %v682 = vpop.trf.xlu0
      %v683 = vpop.trf.xlu0
      %v684 = vpop.trf.xlu0
      %v685 = vpop.trf.xlu0
      %v686 = vpop.trf.xlu0
      %v688 = vsel %vm390, %v639, 0
      %v691 = vsel %vm390, %v640, 0
      %v694 = vsel %vm390, %v641, 0
      %v697 = vsel %vm390, %v642, 0
      %v700 = vsel %vm390, %v643, 0
      %v703 = vsel %vm390, %v644, 0
      %v706 = vsel %vm390, %v645, 0
      %v709 = vsel %vm390, %v646, 0
      %v712 = vsel %vm390, %v647, 0
      %v715 = vsel %vm390, %v648, 0
      %v718 = vsel %vm390, %v649, 0
      %v721 = vsel %vm390, %v650, 0
      %v724 = vsel %vm390, %v651, 0
      %v727 = vsel %vm390, %v652, 0
      %v730 = vsel %vm390, %v653, 0
      %v733 = vsel %vm390, %v654, 0
      %v736 = vsel %vm390, %v671, 0
      %v739 = vsel %vm390, %v672, 0
      %v742 = vsel %vm390, %v673, 0
      %v745 = vsel %vm390, %v674, 0
      %v748 = vsel %vm390, %v675, 0
      %v751 = vsel %vm390, %v676, 0
      %v754 = vsel %vm390, %v677, 0
      %v757 = vsel %vm390, %v678, 0
      %v760 = vsel %vm390, %v679, 0
      %v763 = vsel %vm390, %v680, 0
      %v766 = vsel %vm390, %v681, 0
      %v769 = vsel %vm390, %v682, 0
      %v772 = vsel %vm390, %v683, 0
      %v775 = vsel %vm390, %v684, 0
      %v778 = vsel %vm390, %v685, 0
      %v781 = vsel %vm390, %v686, 0
      %783 = vmatprep.subr.mxu0 %v463
      %784 = vmatpush1.msra.mxu0 %v461
      %785 = vmatprep.subr.mxu0 0.0
      %786 = vmatpush1.msra.mxu0 0.0
      %787 = vmatprep.subr.mxu0 0.0
      %788 = vmatpush1.msra.mxu0 0.0
      %789 = vmatprep.subr.mxu0 0.0
      %790 = vmatpush1.msra.mxu0 0.0
      %791 = vmatprep.subr.mxu0 0.0
      %792 = vmatpush1.msra.mxu0 0.0
      %793 = vmatprep.subr.mxu0 0.0
      %794 = vmatpush1.msra.mxu0 0.0
      %795 = vmatprep.subr.mxu0 0.0
      %796 = vmatpush1.msra.mxu0 0.0
      %797 = vmatprep.subr.mxu0 0.0
      %798 = vmatpush1.msra.mxu0 0.0
      %799 = vmatprep.subr.mxu0 0.0
      %800 = vmatpush1.msra.mxu0 0.0
      %801 = vmatprep.subr.mxu0 0.0
      %802 = vmatpush1.msra.mxu0 0.0
      %803 = vmatprep.subr.mxu0 0.0
      %804 = vmatpush1.msra.mxu0 0.0
      %805 = vmatprep.subr.mxu0 0.0
      %806 = vmatpush1.msra.mxu0 0.0
      %807 = vmatprep.subr.mxu0 0.0
      %808 = vmatpush1.msra.mxu0 0.0
      %809 = vmatprep.subr.mxu0 0.0
      %810 = vmatpush1.msra.mxu0 0.0
      %811 = vmatprep.subr.mxu0 0.0
      %812 = vmatpush1.msra.mxu0 0.0
      %813 = vmatprep.subr.mxu0 0.0
      %814 = vmatpush1.msra.mxu0 0.0
      %815 = vmatprep.subr.mxu0 0.0
      %816 = vmatpush1.msra.mxu0 0.0
      %817 = vmatprep.subr.mxu0 0.0
      %818 = vmatpush1.msra.mxu0 0.0
      %819 = vmatprep.subr.mxu0 0.0
      %820 = vmatpush1.msra.mxu0 0.0
      %821 = vmatprep.subr.mxu0 0.0
      %822 = vmatpush1.msra.mxu0 0.0
      %823 = vmatprep.subr.mxu0 0.0
      %824 = vmatpush1.msra.mxu0 0.0
      %825 = vmatprep.subr.mxu0 0.0
      %826 = vmatpush1.msra.mxu0 0.0
      %827 = vmatprep.subr.mxu0 0.0
      %828 = vmatpush1.msra.mxu0 0.0
      %829 = vmatprep.subr.mxu0 0.0
      %830 = vmatpush1.msra.mxu0 0.0
      %831 = vmatprep.subr.mxu0 0.0
      %832 = vmatpush1.msra.mxu0 0.0
      %833 = vmatprep.subr.mxu0 0.0
      %834 = vmatpush1.msra.mxu0 0.0
      %835 = vmatprep.subr.mxu0 0.0
      %836 = vmatpush1.msra.mxu0 0.0
      %837 = vmatprep.subr.mxu0 0.0
      %838 = vmatpush1.msra.mxu0 0.0
      %839 = vmatprep.subr.mxu0 0.0
      %840 = vmatpush1.msra.mxu0 0.0
      %841 = vmatprep.subr.mxu0 0.0
      %842 = vmatpush1.msra.mxu0 0.0
      %843 = vmatprep.subr.mxu0 0.0
      %844 = vmatpush1.msra.mxu0 0.0
      %845 = vmatprep.subr.mxu0 0.0
      %846 = vmatpush1.msra.mxu0 0.0
      %847 = vmatprep.mubr.f32.mxu0 0.0
      %848 = vmatmul.mubr.f32.gmra.mrb[0].mxu0 %v688
      %v849 = vpop.f32.mrb[0].mxu0
      %v850 = vadd.f32 0.0, %v849
      %v851 = vpop.f32.mrb[0].mxu0
      %v852 = vadd.f32 0.0, %v851
      %853 = vmatprep.mubr.f32.mxu0 0.0
      %854 = vmatmul.mubr.f32.gmra.mrb[0].mxu0 %v691
      %v855 = vpop.f32.mrb[0].mxu0
      %v856 = vadd.f32 0.0, %v855
      %v857 = vpop.f32.mrb[0].mxu0
      %v858 = vadd.f32 0.0, %v857
      %859 = vmatprep.mubr.f32.mxu0 0.0
      %860 = vmatmul.mubr.f32.gmra.mrb[0].mxu0 %v694
      %v861 = vpop.f32.mrb[0].mxu0
      %v862 = vadd.f32 0.0, %v861
      %v863 = vpop.f32.mrb[0].mxu0
      %v864 = vadd.f32 0.0, %v863
      %865 = vmatprep.mubr.f32.mxu0 0.0
      %866 = vmatmul.mubr.f32.gmra.mrb[0].mxu0 %v697
      %v867 = vpop.f32.mrb[0].mxu0
      %v868 = vadd.f32 0.0, %v867
      %v869 = vpop.f32.mrb[0].mxu0
      %v870 = vadd.f32 0.0, %v869
      %871 = vmatprep.mubr.f32.mxu0 0.0
      %872 = vmatmul.mubr.f32.gmra.mrb[0].mxu0 %v700
      %v873 = vpop.f32.mrb[0].mxu0
      %v874 = vadd.f32 0.0, %v873
      %v875 = vpop.f32.mrb[0].mxu0
      %v876 = vadd.f32 0.0, %v875
      %877 = vmatprep.mubr.f32.mxu0 0.0
      %878 = vmatmul.mubr.f32.gmra.mrb[0].mxu0 %v703
      %v879 = vpop.f32.mrb[0].mxu0
      %v880 = vadd.f32 0.0, %v879
      %v881 = vpop.f32.mrb[0].mxu0
      %v882 = vadd.f32 0.0, %v881
      %883 = vmatprep.mubr.f32.mxu0 0.0
      %884 = vmatmul.mubr.f32.gmra.mrb[0].mxu0 %v706
      %v885 = vpop.f32.mrb[0].mxu0
      %v886 = vadd.f32 0.0, %v885
      %v887 = vpop.f32.mrb[0].mxu0
      %v888 = vadd.f32 0.0, %v887
      %889 = vmatprep.mubr.f32.mxu0 0.0
      %890 = vmatmul.mubr.f32.gmra.mrb[0].mxu0 %v709
      %v891 = vpop.f32.mrb[0].mxu0
      %v892 = vadd.f32 0.0, %v891
      %v893 = vpop.f32.mrb[0].mxu0
      %v894 = vadd.f32 0.0, %v893
      %895 = vmatprep.mubr.f32.mxu0 0.0
      %896 = vmatmul.mubr.f32.gmra.mrb[0].mxu0 %v712
      %v897 = vpop.f32.mrb[0].mxu0
      %v898 = vadd.f32 0.0, %v897
      %v899 = vpop.f32.mrb[0].mxu0
      %v900 = vadd.f32 0.0, %v899
      %901 = vmatprep.mubr.f32.mxu0 0.0
      %902 = vmatmul.mubr.f32.gmra.mrb[0].mxu0 %v715
      %v903 = vpop.f32.mrb[0].mxu0
      %v904 = vadd.f32 0.0, %v903
      %v905 = vpop.f32.mrb[0].mxu0
      %v906 = vadd.f32 0.0, %v905
      %907 = vmatprep.mubr.f32.mxu0 0.0
      %908 = vmatmul.mubr.f32.gmra.mrb[0].mxu0 %v718
      %v909 = vpop.f32.mrb[0].mxu0
      %v910 = vadd.f32 0.0, %v909
      %v911 = vpop.f32.mrb[0].mxu0
      %v912 = vadd.f32 0.0, %v911
      %913 = vmatprep.mubr.f32.mxu0 0.0
      %914 = vmatmul.mubr.f32.gmra.mrb[0].mxu0 %v721
      %v915 = vpop.f32.mrb[0].mxu0
      %v916 = vadd.f32 0.0, %v915
      %v917 = vpop.f32.mrb[0].mxu0
      %v918 = vadd.f32 0.0, %v917
      %919 = vmatprep.mubr.f32.mxu0 0.0
      %920 = vmatmul.mubr.f32.gmra.mrb[0].mxu0 %v724
      %v921 = vpop.f32.mrb[0].mxu0
      %v922 = vadd.f32 0.0, %v921
      %v923 = vpop.f32.mrb[0].mxu0
      %v924 = vadd.f32 0.0, %v923
      %925 = vmatprep.mubr.f32.mxu0 0.0
      %926 = vmatmul.mubr.f32.gmra.mrb[0].mxu0 %v727
      %v927 = vpop.f32.mrb[0].mxu0
      %v928 = vadd.f32 0.0, %v927
      %v929 = vpop.f32.mrb[0].mxu0
      %v930 = vadd.f32 0.0, %v929
      %931 = vmatprep.mubr.f32.mxu0 0.0
      %932 = vmatmul.mubr.f32.gmra.mrb[0].mxu0 %v730
      %v933 = vpop.f32.mrb[0].mxu0
      %v934 = vadd.f32 0.0, %v933
      %v935 = vpop.f32.mrb[0].mxu0
      %v936 = vadd.f32 0.0, %v935
      %937 = vmatprep.mubr.f32.mxu0 0.0
      %938 = vmatmul.mubr.f32.gmra.mrb[0].mxu0 %v733
      %v939 = vpop.f32.mrb[0].mxu0
      %v940 = vadd.f32 0.0, %v939
      %v941 = vpop.f32.mrb[0].mxu0
      %v942 = vadd.f32 0.0, %v941
      %943 = vmatprep.mubr.f32.mxu0 0.0
      %944 = vmatmul.mubr.f32.gmra.mrb[0].mxu0 %v736
      %v945 = vpop.f32.mrb[0].mxu0
      %v946 = vadd.f32 0.0, %v945
      %v947 = vpop.f32.mrb[0].mxu0
      %v948 = vadd.f32 0.0, %v947
      %949 = vmatprep.mubr.f32.mxu0 0.0
      %950 = vmatmul.mubr.f32.gmra.mrb[0].mxu0 %v739
      %v951 = vpop.f32.mrb[0].mxu0
      %v952 = vadd.f32 0.0, %v951
      %v953 = vpop.f32.mrb[0].mxu0
      %v954 = vadd.f32 0.0, %v953
      %955 = vmatprep.mubr.f32.mxu0 0.0
      %956 = vmatmul.mubr.f32.gmra.mrb[0].mxu0 %v742
      %v957 = vpop.f32.mrb[0].mxu0
      %v958 = vadd.f32 0.0, %v957
      %v959 = vpop.f32.mrb[0].mxu0
      %v960 = vadd.f32 0.0, %v959
      %961 = vmatprep.mubr.f32.mxu0 0.0
      %962 = vmatmul.mubr.f32.gmra.mrb[0].mxu0 %v745
      %v963 = vpop.f32.mrb[0].mxu0
      %v964 = vadd.f32 0.0, %v963
      %v965 = vpop.f32.mrb[0].mxu0
      %v966 = vadd.f32 0.0, %v965
      %967 = vmatprep.mubr.f32.mxu0 0.0
      %968 = vmatmul.mubr.f32.gmra.mrb[0].mxu0 %v748
      %v969 = vpop.f32.mrb[0].mxu0
      %v970 = vadd.f32 0.0, %v969
      %v971 = vpop.f32.mrb[0].mxu0
      %v972 = vadd.f32 0.0, %v971
      %973 = vmatprep.mubr.f32.mxu0 0.0
      %974 = vmatmul.mubr.f32.gmra.mrb[0].mxu0 %v751
      %v975 = vpop.f32.mrb[0].mxu0
      %v976 = vadd.f32 0.0, %v975
      %v977 = vpop.f32.mrb[0].mxu0
      %v978 = vadd.f32 0.0, %v977
      %979 = vmatprep.mubr.f32.mxu0 0.0
      %980 = vmatmul.mubr.f32.gmra.mrb[0].mxu0 %v754
      %v981 = vpop.f32.mrb[0].mxu0
      %v982 = vadd.f32 0.0, %v981
      %v983 = vpop.f32.mrb[0].mxu0
      %v984 = vadd.f32 0.0, %v983
      %985 = vmatprep.mubr.f32.mxu0 0.0
      %986 = vmatmul.mubr.f32.gmra.mrb[0].mxu0 %v757
      %v987 = vpop.f32.mrb[0].mxu0
      %v988 = vadd.f32 0.0, %v987
      %v989 = vpop.f32.mrb[0].mxu0
      %v990 = vadd.f32 0.0, %v989
      %991 = vmatprep.mubr.f32.mxu0 0.0
      %992 = vmatmul.mubr.f32.gmra.mrb[0].mxu0 %v760
      %v993 = vpop.f32.mrb[0].mxu0
      %v994 = vadd.f32 0.0, %v993
      %v995 = vpop.f32.mrb[0].mxu0
      %v996 = vadd.f32 0.0, %v995
      %997 = vmatprep.mubr.f32.mxu0 0.0
      %998 = vmatmul.mubr.f32.gmra.mrb[0].mxu0 %v763
      %v999 = vpop.f32.mrb[0].mxu0
      %v1000 = vadd.f32 0.0, %v999
      %v1001 = vpop.f32.mrb[0].mxu0
      %v1002 = vadd.f32 0.0, %v1001
      %1003 = vmatprep.mubr.f32.mxu0 0.0
      %1004 = vmatmul.mubr.f32.gmra.mrb[0].mxu0 %v766
      %v1005 = vpop.f32.mrb[0].mxu0
      %v1006 = vadd.f32 0.0, %v1005
      %v1007 = vpop.f32.mrb[0].mxu0
      %v1008 = vadd.f32 0.0, %v1007
      %1009 = vmatprep.mubr.f32.mxu0 0.0
      %1010 = vmatmul.mubr.f32.gmra.mrb[0].mxu0 %v769
      %v1011 = vpop.f32.mrb[0].mxu0
      %v1012 = vadd.f32 0.0, %v1011
      %v1013 = vpop.f32.mrb[0].mxu0
      %v1014 = vadd.f32 0.0, %v1013
      %1015 = vmatprep.mubr.f32.mxu0 0.0
      %1016 = vmatmul.mubr.f32.gmra.mrb[0].mxu0 %v772
      %v1017 = vpop.f32.mrb[0].mxu0
      %v1018 = vadd.f32 0.0, %v1017
      %v1019 = vpop.f32.mrb[0].mxu0
      %v1020 = vadd.f32 0.0, %v1019
      %1021 = vmatprep.mubr.f32.mxu0 0.0
      %1022 = vmatmul.mubr.f32.gmra.mrb[0].mxu0 %v775
      %v1023 = vpop.f32.mrb[0].mxu0
      %v1024 = vadd.f32 0.0, %v1023
      %v1025 = vpop.f32.mrb[0].mxu0
      %v1026 = vadd.f32 0.0, %v1025
      %1027 = vmatprep.mubr.f32.mxu0 0.0
      %1028 = vmatmul.mubr.f32.gmra.mrb[0].mxu0 %v778
      %v1029 = vpop.f32.mrb[0].mxu0
      %v1030 = vadd.f32 0.0, %v1029
      %v1031 = vpop.f32.mrb[0].mxu0
      %v1032 = vadd.f32 0.0, %v1031
      %1033 = vmatprep.mubr.f32.mxu0 0.0
      %1034 = vmatmul.mubr.f32.gmra.mrb[0].mxu0 %v781
      %v1035 = vpop.f32.mrb[0].mxu0
      %v1036 = vadd.f32 0.0, %v1035
      %v1037 = vpop.f32.mrb[0].mxu0
      %v1038 = vadd.f32 0.0, %v1037
      %1039 = vdwg.mxu0
      %v1040 = vmax.f32 %v850, %v862
      %v1041 = vmax.f32 %v856, %v868
      %v1042 = vmax.f32 %v1040, %v874
      %v1043 = vmax.f32 %v1041, %v880
      %v1044 = vmax.f32 %v1042, %v886
      %v1045 = vmax.f32 %v1043, %v892
      %v1046 = vmax.f32 %v1044, %v898
      %v1047 = vmax.f32 %v1045, %v904
      %v1048 = vmax.f32 %v1046, %v910
      %v1049 = vmax.f32 %v1047, %v916
      %v1050 = vmax.f32 %v1048, %v922
      %v1051 = vmax.f32 %v1049, %v928
      %v1052 = vmax.f32 %v1050, %v934
      %v1053 = vmax.f32 %v1051, %v940
      %v1054 = vmax.f32 %v1052, %v946
      %v1055 = vmax.f32 %v1053, %v952
      %v1056 = vmax.f32 %v1054, %v958
      %v1057 = vmax.f32 %v1055, %v964
      %v1058 = vmax.f32 %v1056, %v970
      %v1059 = vmax.f32 %v1057, %v976
      %v1060 = vmax.f32 %v1058, %v982
      %v1061 = vmax.f32 %v1059, %v988
      %v1062 = vmax.f32 %v1060, %v994
      %v1063 = vmax.f32 %v1061, %v1000
      %v1064 = vmax.f32 %v1062, %v1006
      %v1065 = vmax.f32 %v1063, %v1012
      %v1066 = vmax.f32 %v1064, %v1018
      %v1067 = vmax.f32 %v1065, %v1024
      %v1068 = vmax.f32 %v1066, %v1030
      %v1069 = vmax.f32 %v1067, %v1036
      %v1070 = vmax.f32 %v1068, %v1069
      %v1071 = vrot.slane %v1070, 4
      %v1072 = vmax.f32 %v1070, %v1071
      %v1073 = vrot.slane %v1072, 2
      %v1074 = vmax.f32 %v1072, %v1073
      %v1075 = vrot.slane %v1074, 1
      %v1076 = vmax.f32 %v1074, %v1075
      %v1077 = vmax.f32 %v852, %v864
      %v1078 = vmax.f32 %v858, %v870
      %v1079 = vmax.f32 %v1077, %v876
      %v1080 = vmax.f32 %v1078, %v882
      %v1081 = vmax.f32 %v1079, %v888
      %v1082 = vmax.f32 %v1080, %v894
      %v1083 = vmax.f32 %v1081, %v900
      %v1084 = vmax.f32 %v1082, %v906
      %v1085 = vmax.f32 %v1083, %v912
      %v1086 = vmax.f32 %v1084, %v918
      %v1087 = vmax.f32 %v1085, %v924
      %v1088 = vmax.f32 %v1086, %v930
      %v1089 = vmax.f32 %v1087, %v936
      %v1090 = vmax.f32 %v1088, %v942
      %v1091 = vmax.f32 %v1089, %v948
      %v1092 = vmax.f32 %v1090, %v954
      %v1093 = vmax.f32 %v1091, %v960
      %v1094 = vmax.f32 %v1092, %v966
      %v1095 = vmax.f32 %v1093, %v972
      %v1096 = vmax.f32 %v1094, %v978
      %v1097 = vmax.f32 %v1095, %v984
      %v1098 = vmax.f32 %v1096, %v990
      %v1099 = vmax.f32 %v1097, %v996
      %v1100 = vmax.f32 %v1098, %v1002
      %v1101 = vmax.f32 %v1099, %v1008
      %v1102 = vmax.f32 %v1100, %v1014
      %v1103 = vmax.f32 %v1101, %v1020
      %v1104 = vmax.f32 %v1102, %v1026
      %v1105 = vmax.f32 %v1103, %v1032
      %v1106 = vmax.f32 %v1104, %v1038
      %v1107 = vmax.f32 %v1105, %v1106
      %v1108 = vrot.slane %v1107, 4
      %v1109 = vmax.f32 %v1107, %v1108
      %v1110 = vrot.slane %v1109, 2
      %v1111 = vmax.f32 %v1109, %v1110
      %v1112 = vrot.slane %v1111, 1
      %v1113 = vmax.f32 %v1111, %v1112
      %v1114 = vsub.f32 %v850, %v1076
      %v1115 = vsub.f32 %v852, %v1113
      %v1116 = vsub.f32 %v856, %v1076
      %v1117 = vsub.f32 %v858, %v1113
      %v1118 = vsub.f32 %v862, %v1076
      %v1119 = vsub.f32 %v864, %v1113
      %v1120 = vsub.f32 %v868, %v1076
      %v1121 = vsub.f32 %v870, %v1113
      %v1122 = vsub.f32 %v874, %v1076
      %v1123 = vsub.f32 %v876, %v1113
      %v1124 = vsub.f32 %v880, %v1076
      %v1125 = vsub.f32 %v882, %v1113
      %v1126 = vsub.f32 %v886, %v1076
      %v1127 = vsub.f32 %v888, %v1113
      %v1128 = vsub.f32 %v892, %v1076
      %v1129 = vsub.f32 %v894, %v1113
      %v1130 = vsub.f32 %v898, %v1076
      %v1131 = vsub.f32 %v900, %v1113
      %v1132 = vsub.f32 %v904, %v1076
      %v1133 = vsub.f32 %v906, %v1113
      %v1134 = vsub.f32 %v910, %v1076
      %v1135 = vsub.f32 %v912, %v1113
      %v1136 = vsub.f32 %v916, %v1076
      %v1137 = vsub.f32 %v918, %v1113
      %v1138 = vsub.f32 %v922, %v1076
      %v1139 = vsub.f32 %v924, %v1113
      %v1140 = vsub.f32 %v928, %v1076
      %v1141 = vsub.f32 %v930, %v1113
      %v1142 = vsub.f32 %v934, %v1076
      %v1143 = vsub.f32 %v936, %v1113
      %v1144 = vsub.f32 %v940, %v1076
      %v1145 = vsub.f32 %v942, %v1113
      %v1146 = vsub.f32 %v946, %v1076
      %v1147 = vsub.f32 %v948, %v1113
      %v1148 = vsub.f32 %v952, %v1076
      %v1149 = vsub.f32 %v954, %v1113
      %v1150 = vsub.f32 %v958, %v1076
      %v1151 = vsub.f32 %v960, %v1113
      %v1152 = vsub.f32 %v964, %v1076
      %v1153 = vsub.f32 %v966, %v1113
      %v1154 = vsub.f32 %v970, %v1076
      %v1155 = vsub.f32 %v972, %v1113
      %v1156 = vsub.f32 %v976, %v1076
      %v1157 = vsub.f32 %v978, %v1113
      %v1158 = vsub.f32 %v982, %v1076
      %v1159 = vsub.f32 %v984, %v1113
      %v1160 = vsub.f32 %v988, %v1076
      %v1161 = vsub.f32 %v990, %v1113
      %v1162 = vsub.f32 %v994, %v1076
      %v1163 = vsub.f32 %v996, %v1113
      %v1164 = vsub.f32 %v1000, %v1076
      %v1165 = vsub.f32 %v1002, %v1113
      %v1166 = vsub.f32 %v1006, %v1076
      %v1167 = vsub.f32 %v1008, %v1113
      %v1168 = vsub.f32 %v1012, %v1076
      %v1169 = vsub.f32 %v1014, %v1113
      %v1170 = vsub.f32 %v1018, %v1076
      %v1171 = vsub.f32 %v1020, %v1113
      %v1172 = vsub.f32 %v1024, %v1076
      %v1173 = vsub.f32 %v1026, %v1113
      %v1174 = vsub.f32 %v1030, %v1076
      %v1175 = vsub.f32 %v1032, %v1113
      %v1176 = vsub.f32 %v1036, %v1076
      %v1177 = vsub.f32 %v1038, %v1113
      %v1178 = vmul.f32 %v1114, 1.442695
      %v1179 = vpow.pop %v1178
      %v1180 = vmul.f32 %v1115, 1.442695
      %v1181 = vpow.pop %v1180
      %v1182 = vmul.f32 %v1116, 1.442695
      %v1183 = vpow.pop %v1182
      %v1184 = vmul.f32 %v1117, 1.442695
      %v1185 = vpow.pop %v1184
      %v1186 = vmul.f32 %v1118, 1.442695
      %v1187 = vpow.pop %v1186
      %v1188 = vmul.f32 %v1119, 1.442695
      %v1189 = vpow.pop %v1188
      %v1190 = vmul.f32 %v1120, 1.442695
      %v1191 = vpow.pop %v1190
      %v1192 = vmul.f32 %v1121, 1.442695
      %v1193 = vpow.pop %v1192
      %v1194 = vmul.f32 %v1122, 1.442695
      %v1195 = vpow.pop %v1194
      %v1196 = vmul.f32 %v1123, 1.442695
      %v1197 = vpow.pop %v1196
      %v1198 = vmul.f32 %v1124, 1.442695
      %v1199 = vpow.pop %v1198
      %v1200 = vmul.f32 %v1125, 1.442695
      %v1201 = vpow.pop %v1200
      %v1202 = vmul.f32 %v1126, 1.442695
      %v1203 = vpow.pop %v1202
      %v1204 = vmul.f32 %v1127, 1.442695
      %v1205 = vpow.pop %v1204
      %v1206 = vmul.f32 %v1128, 1.442695
      %v1207 = vpow.pop %v1206
      %v1208 = vmul.f32 %v1129, 1.442695
      %v1209 = vpow.pop %v1208
      %v1210 = vmul.f32 %v1130, 1.442695
      %v1211 = vpow.pop %v1210
      %v1212 = vmul.f32 %v1131, 1.442695
      %v1213 = vpow.pop %v1212
      %v1214 = vmul.f32 %v1132, 1.442695
      %v1215 = vpow.pop %v1214
      %v1216 = vmul.f32 %v1133, 1.442695
      %v1217 = vpow.pop %v1216
      %v1218 = vmul.f32 %v1134, 1.442695
      %v1219 = vpow.pop %v1218
      %v1220 = vmul.f32 %v1135, 1.442695
      %v1221 = vpow.pop %v1220
      %v1222 = vmul.f32 %v1136, 1.442695
      %v1223 = vpow.pop %v1222
      %v1224 = vmul.f32 %v1137, 1.442695
      %v1225 = vpow.pop %v1224
      %v1226 = vmul.f32 %v1138, 1.442695
      %v1227 = vpow.pop %v1226
      %v1228 = vmul.f32 %v1139, 1.442695
      %v1229 = vpow.pop %v1228
      %v1230 = vmul.f32 %v1140, 1.442695
      %v1231 = vpow.pop %v1230
      %v1232 = vmul.f32 %v1141, 1.442695
      %v1233 = vpow.pop %v1232
      %v1234 = vmul.f32 %v1142, 1.442695
      %v1235 = vpow.pop %v1234
      %v1236 = vmul.f32 %v1143, 1.442695
      %v1237 = vpow.pop %v1236
      %v1238 = vmul.f32 %v1144, 1.442695
      %v1239 = vpow.pop %v1238
      %v1240 = vmul.f32 %v1145, 1.442695
      %v1241 = vpow.pop %v1240
      %v1242 = vmul.f32 %v1146, 1.442695
      %v1243 = vpow.pop %v1242
      %v1244 = vmul.f32 %v1147, 1.442695
      %v1245 = vpow.pop %v1244
      %v1246 = vmul.f32 %v1148, 1.442695
      %v1247 = vpow.pop %v1246
      %v1248 = vmul.f32 %v1149, 1.442695
      %v1249 = vpow.pop %v1248
      %v1250 = vmul.f32 %v1150, 1.442695
      %v1251 = vpow.pop %v1250
      %v1252 = vmul.f32 %v1151, 1.442695
      %v1253 = vpow.pop %v1252
      %v1254 = vmul.f32 %v1152, 1.442695
      %v1255 = vpow.pop %v1254
      %v1256 = vmul.f32 %v1153, 1.442695
      %v1257 = vpow.pop %v1256
      %v1258 = vmul.f32 %v1154, 1.442695
      %v1259 = vpow.pop %v1258
      %v1260 = vmul.f32 %v1155, 1.442695
      %v1261 = vpow.pop %v1260
      %v1262 = vmul.f32 %v1156, 1.442695
      %v1263 = vpow.pop %v1262
      %v1264 = vmul.f32 %v1157, 1.442695
      %v1265 = vpow.pop %v1264
      %v1266 = vmul.f32 %v1158, 1.442695
      %v1267 = vpow.pop %v1266
      %v1268 = vmul.f32 %v1159, 1.442695
      %v1269 = vpow.pop %v1268
      %v1270 = vmul.f32 %v1160, 1.442695
      %v1271 = vpow.pop %v1270
      %v1272 = vmul.f32 %v1161, 1.442695
      %v1273 = vpow.pop %v1272
      %v1274 = vmul.f32 %v1162, 1.442695
      %v1275 = vpow.pop %v1274
      %v1276 = vmul.f32 %v1163, 1.442695
      %v1277 = vpow.pop %v1276
      %v1278 = vmul.f32 %v1164, 1.442695
      %v1279 = vpow.pop %v1278
      %v1280 = vmul.f32 %v1165, 1.442695
      %v1281 = vpow.pop %v1280
      %v1282 = vmul.f32 %v1166, 1.442695
      %v1283 = vpow.pop %v1282
      %v1284 = vmul.f32 %v1167, 1.442695
      %v1285 = vpow.pop %v1284
      %v1286 = vmul.f32 %v1168, 1.442695
      %v1287 = vpow.pop %v1286
      %v1288 = vmul.f32 %v1169, 1.442695
      %v1289 = vpow.pop %v1288
      %v1290 = vmul.f32 %v1170, 1.442695
      %v1291 = vpow.pop %v1290
      %v1292 = vmul.f32 %v1171, 1.442695
      %v1293 = vpow.pop %v1292
      %v1294 = vmul.f32 %v1172, 1.442695
      %v1295 = vpow.pop %v1294
      %v1296 = vmul.f32 %v1173, 1.442695
      %v1297 = vpow.pop %v1296
      %v1298 = vmul.f32 %v1174, 1.442695
      %v1299 = vpow.pop %v1298
      %v1300 = vmul.f32 %v1175, 1.442695
      %v1301 = vpow.pop %v1300
      %v1302 = vmul.f32 %v1176, 1.442695
      %v1303 = vpow.pop %v1302
      %v1304 = vmul.f32 %v1177, 1.442695
      %v1305 = vpow.pop %v1304
      %v1306 = vadd.f32 %v1179, %v1183
      %v1307 = vadd.f32 %v1306, %v1187
      %v1308 = vadd.f32 %v1307, %v1191
      %v1309 = vadd.f32 %v1308, %v1195
      %v1310 = vadd.f32 %v1309, %v1199
      %v1311 = vadd.f32 %v1310, %v1203
      %v1312 = vadd.f32 %v1311, %v1207
      %v1313 = vadd.f32 %v1312, %v1211
      %v1314 = vadd.f32 %v1313, %v1215
      %v1315 = vadd.f32 %v1314, %v1219
      %v1316 = vadd.f32 %v1315, %v1223
      %v1317 = vadd.f32 %v1316, %v1227
      %v1318 = vadd.f32 %v1317, %v1231
      %v1319 = vadd.f32 %v1318, %v1235
      %v1320 = vadd.f32 %v1319, %v1239
      %v1321 = vadd.f32 %v1320, %v1243
      %v1322 = vadd.f32 %v1321, %v1247
      %v1323 = vadd.f32 %v1322, %v1251
      %v1324 = vadd.f32 %v1323, %v1255
      %v1325 = vadd.f32 %v1324, %v1259
      %v1326 = vadd.f32 %v1325, %v1263
      %v1327 = vadd.f32 %v1326, %v1267
      %v1328 = vadd.f32 %v1327, %v1271
      %v1329 = vadd.f32 %v1328, %v1275
      %v1330 = vadd.f32 %v1329, %v1279
      %v1331 = vadd.f32 %v1330, %v1283
      %v1332 = vadd.f32 %v1331, %v1287
      %v1333 = vadd.f32 %v1332, %v1291
      %v1334 = vadd.f32 %v1333, %v1295
      %v1335 = vadd.f32 %v1334, %v1299
      %v1336 = vadd.f32 %v1335, %v1303
      %v1337 = vrot.slane %v1336, 4
      %v1338 = vadd.f32 %v1336, %v1337
      %v1339 = vrot.slane %v1338, 2
      %v1340 = vadd.f32 %v1338, %v1339
      %v1341 = vrot.slane %v1340, 1
      %v1342 = vadd.f32 %v1340, %v1341
      %v1343 = vadd.f32 %v1181, %v1185
      %v1344 = vadd.f32 %v1343, %v1189
      %v1345 = vadd.f32 %v1344, %v1193
      %v1346 = vadd.f32 %v1345, %v1197
      %v1347 = vadd.f32 %v1346, %v1201
      %v1348 = vadd.f32 %v1347, %v1205
      %v1349 = vadd.f32 %v1348, %v1209
      %v1350 = vadd.f32 %v1349, %v1213
      %v1351 = vadd.f32 %v1350, %v1217
      %v1352 = vadd.f32 %v1351, %v1221
      %v1353 = vadd.f32 %v1352, %v1225
      %v1354 = vadd.f32 %v1353, %v1229
      %v1355 = vadd.f32 %v1354, %v1233
      %v1356 = vadd.f32 %v1355, %v1237
      %v1357 = vadd.f32 %v1356, %v1241
      %v1358 = vadd.f32 %v1357, %v1245
      %v1359 = vadd.f32 %v1358, %v1249
      %v1360 = vadd.f32 %v1359, %v1253
      %v1361 = vadd.f32 %v1360, %v1257
      %v1362 = vadd.f32 %v1361, %v1261
      %v1363 = vadd.f32 %v1362, %v1265
      %v1364 = vadd.f32 %v1363, %v1269
      %v1365 = vadd.f32 %v1364, %v1273
      %v1366 = vadd.f32 %v1365, %v1277
      %v1367 = vadd.f32 %v1366, %v1281
      %v1368 = vadd.f32 %v1367, %v1285
      %v1369 = vadd.f32 %v1368, %v1289
      %v1370 = vadd.f32 %v1369, %v1293
      %v1371 = vadd.f32 %v1370, %v1297
      %v1372 = vadd.f32 %v1371, %v1301
      %v1373 = vadd.f32 %v1372, %v1305
      %v1374 = vrot.slane %v1373, 4
      %v1375 = vadd.f32 %v1373, %v1374
      %v1376 = vrot.slane %v1375, 2
      %v1377 = vadd.f32 %v1375, %v1376
      %v1378 = vrot.slane %v1377, 1
      %v1379 = vadd.f32 %v1377, %v1378
      %1380 = vmatprep.subr.mxu0 %v1181
      %1381 = vmatpush1.msra.mxu0 %v1179
      %1382 = vmatprep.subr.mxu0 %v1185
      %1383 = vmatpush1.msra.mxu0 %v1183
      %1384 = vmatprep.subr.mxu0 %v1189
      %1385 = vmatpush1.msra.mxu0 %v1187
      %1386 = vmatprep.subr.mxu0 %v1193
      %1387 = vmatpush1.msra.mxu0 %v1191
      %1388 = vmatprep.subr.mxu0 %v1197
      %1389 = vmatpush1.msra.mxu0 %v1195
      %1390 = vmatprep.subr.mxu0 %v1201
      %1391 = vmatpush1.msra.mxu0 %v1199
      %1392 = vmatprep.subr.mxu0 %v1205
      %1393 = vmatpush1.msra.mxu0 %v1203
      %1394 = vmatprep.subr.mxu0 %v1209
      %1395 = vmatpush1.msra.mxu0 %v1207
      %1396 = vmatprep.subr.mxu0 %v1213
      %1397 = vmatpush1.msra.mxu0 %v1211
      %1398 = vmatprep.subr.mxu0 %v1217
      %1399 = vmatpush1.msra.mxu0 %v1215
      %1400 = vmatprep.subr.mxu0 %v1221
      %1401 = vmatpush1.msra.mxu0 %v1219
      %1402 = vmatprep.subr.mxu0 %v1225
      %1403 = vmatpush1.msra.mxu0 %v1223
      %1404 = vmatprep.subr.mxu0 %v1229
      %1405 = vmatpush1.msra.mxu0 %v1227
      %1406 = vmatprep.subr.mxu0 %v1233
      %1407 = vmatpush1.msra.mxu0 %v1231
      %1408 = vmatprep.subr.mxu0 %v1237
      %1409 = vmatpush1.msra.mxu0 %v1235
      %1410 = vmatprep.subr.mxu0 %v1241
      %1411 = vmatpush1.msra.mxu0 %v1239
      %1412 = vmatprep.subr.mxu0 %v1245
      %1413 = vmatpush1.msra.mxu0 %v1243
      %1414 = vmatprep.subr.mxu0 %v1249
      %1415 = vmatpush1.msra.mxu0 %v1247
      %1416 = vmatprep.subr.mxu0 %v1253
      %1417 = vmatpush1.msra.mxu0 %v1251
      %1418 = vmatprep.subr.mxu0 %v1257
      %1419 = vmatpush1.msra.mxu0 %v1255
      %1420 = vmatprep.subr.mxu0 %v1261
      %1421 = vmatpush1.msra.mxu0 %v1259
      %1422 = vmatprep.subr.mxu0 %v1265
      %1423 = vmatpush1.msra.mxu0 %v1263
      %1424 = vmatprep.subr.mxu0 %v1269
      %1425 = vmatpush1.msra.mxu0 %v1267
      %1426 = vmatprep.subr.mxu0 %v1273
      %1427 = vmatpush1.msra.mxu0 %v1271
      %1428 = vmatprep.subr.mxu0 %v1277
      %1429 = vmatpush1.msra.mxu0 %v1275
      %1430 = vmatprep.subr.mxu0 %v1281
      %1431 = vmatpush1.msra.mxu0 %v1279
      %1432 = vmatprep.subr.mxu0 %v1285
      %1433 = vmatpush1.msra.mxu0 %v1283
      %1434 = vmatprep.subr.mxu0 %v1289
      %1435 = vmatpush1.msra.mxu0 %v1287
      %1436 = vmatprep.subr.mxu0 %v1293
      %1437 = vmatpush1.msra.mxu0 %v1291
      %1438 = vmatprep.subr.mxu0 %v1297
      %1439 = vmatpush1.msra.mxu0 %v1295
      %1440 = vmatprep.subr.mxu0 %v1301
      %1441 = vmatpush1.msra.mxu0 %v1299
      %1442 = vmatprep.subr.mxu0 %v1305
      %1443 = vmatpush1.msra.mxu0 %v1303
      %1444 = vmatprep.mubr.f32.mxu0 %v621
      %1445 = vmatmul.mubr.f32.gmra.mrb[0].mxu0 %v619
      %v1446 = vpop.f32.mrb[0].mxu0
      %v1447 = vadd.f32 0.0, %v1446
      %v1448 = vpop.f32.mrb[0].mxu0
      %v1449 = vadd.f32 0.0, %v1448
      %1450 = vdwg.mxu0
      %v1451 = vrcp.pop %v1342
      %v1452 = vrcp.pop %v1379
      %v1453 = vmul.f32 %v1447, %v1451
      %v1454 = vmul.f32 %v1449, %v1452
      %v1455 = vadd.f32 %v379, %v1453
      %v1456 = vadd.f32 %v380, %v1454
      %1457 = vst [vmem:[%s372] sm:$0xff] %v1455
      %1458 = vst [vmem:[%s372 + $0x8] sm:$0xff] %v1456
      %p1459 = scmp.lt.s32.totalorder %s20, 1
      %s1460 = scalar_select %p1459, %s20, 1
      %s1461 = smul.addr %s1460, 2
      %s1462 = smul.addr %s1461, 8
      %s1463 = scalar_lea.vmem %s9, %s1462
      // Predicated region
      $region57: #{self_attention_forward.1} parent=55 // pred_check
        %p1464 = pneg %p242
      $region58: #{self_attention_forward.1} parent=55 // pred_check_branch
        %1466 = sbr.rel (%p1464) target = $region60
      $region59: #{self_attention_forward.1} parent=55 // pred_region
        _
      $region60: #{self_attention_forward.1} parent=55 // pred_fallthru
        _
    $region56: #{self_attention_forward.1} parent=5 // pred_fallthru
      _
    %p1467 = scmp.le.s32.totalorder 2, %s15
    // Predicated region
    $region61: #{self_attention_forward.1} parent=5 // pred_check
      %p1468 = pneg %p1467
    $region62: #{self_attention_forward.1} parent=5 // pred_check_branch
      %1470 = sbr.rel (%p1468) target = $region64
    $region63: #{self_attention_forward.1} parent=5 // pred_region
      %s1471 = ssub.s32 %s15, 2
      // Predicated region
      $region65: #{self_attention_forward.1} parent=63 // pred_check
        %p1472 = pneg %p248
      $region66: #{self_attention_forward.1} parent=63 // pred_check_branch
        %1474 = sbr.rel (%p1472) target = $region68
      $region67: #{self_attention_forward.1} parent=63 // pred_region
        %p1475 = scmp.lt.s32.totalorder %s21, 1
        %s1476 = scalar_select %p1475, %s21, 1
        %s1477 = smul.addr %s1476, 2
        %s1478 = smul.addr %s1477, 8
        %s1479 = scalar_lea.vmem %s9, %s1478
      $region68: #{self_attention_forward.1} parent=63 // pred_fallthru
        _
    $region64: #{self_attention_forward.1} parent=5 // pred_fallthru
      _
  $region6: #{self_attention_forward.1} parent=0 // loop_footer
    %s19 = sadd.s32 1, %s15
  $region7: #{self_attention_forward.1} parent=0 // loop_footer_branch
    %14 = sbr.rel target = $region3
  $region8: #{self_attention_forward.1} parent=0 // loop_exit
    _

</llo_original>
